<compile_context>
chip_gen: v7x
topology: tpu7x:2x2x1
jax: 0.10.0
libtpu: 0.0.40
codegen_flags: <defaults>
</compile_context>

<pallas_src>
import math
from functools import partial

import numpy as np
import jax
import jax.numpy as jnp
from jax.experimental import pallas as pl
from jax.experimental.pallas import tpu as pltpu

# ----------------------------- configuration -------------------------------
HIDDEN = 32          # hidden_channels
FILTERS = 32         # num_filters
GAUSS = 16           # num_gaussians
N_INTER = 3          # num_interactions
CUTOFF = 10.0
LOG2 = math.log(2.0)


def _sp(x):
    # plain softplus (numerically stable); the ShiftedSoftplus "- log 2" is
    # folded into the next layer's bias on the host.
    return jnp.maximum(x, 0.0) + jnp.log1p(jnp.exp(-jnp.abs(x)))


def _ssp(x):
    # true ShiftedSoftplus (reference only)
    return jnp.maximum(x, 0.0) + jnp.log1p(jnp.exp(-jnp.abs(x))) - LOG2


# ------------------------------ Pallas kernel -------------------------------
def _schnet_kernel(
    d_ref, cf_ref, h0t_ref, boh_ref, mu_ref, rrep_ref, ssel_ref,
    wm1t_ref, bm1t_ref, wm2t_ref, bm2t_ref,          # CFConv filter MLP (per block)
    wc1t_ref, wc2t_ref, bc2t_ref,                    # CFConv lin1 (no bias) / lin2
    wlt_ref, blt_ref,                                # InteractionBlock.lin
    wf1t_ref, bf1t_ref, wf2t_ref, bf2_ref,           # final readout MLP
    out_ref,
    ht_sc,
    *, coeff, n_blocks,
):
    l = pl.program_id(1)                      # interaction block (fast axis)

    # pre-block node state for this tile ([H, TI]); each tile is re-seeded
    # from the embedding at its first block, so tiles are fully independent.
    ht_prev = jnp.where(l == 0, h0t_ref[...], ht_sc[...])

    # CFConv.lin1 (no bias) on the tile's own sources, transposed: [F, TI]
    x1t = jnp.dot(wc1t_ref[...], ht_prev, preferred_element_type=jnp.float32)
    # replicate sources across the TI target groups on lanes -> [F, TE]
    x1e = jnp.dot(x1t, rrep_ref[...], preferred_element_type=jnp.float32)

    # --- per-edge path, lane-dense (edges on lanes, features on sublanes) ---
    d = d_ref[...]                            # [1, TE] pairwise distances
    sm = d - mu_ref[...]                      # [G, TE] (d_ij - mu_g)
    ea = jnp.exp(coeff * sm * sm)             # GaussianSmearing
    tf = _sp(jnp.dot(wm1t_ref[...], ea, preferred_element_type=jnp.float32)
             + bm1t_ref[...])                 # filter MLP layer 1   [F, TE]
    wfil = (jnp.dot(wm2t_ref[...], tf, preferred_element_type=jnp.float32)
            + bm2t_ref[...])                  # filter MLP layer 2   [F, TE]
    msg = wfil * x1e * cf_ref[...]            # W_ij * x_j * C_ij    [F, TE]

    # aggregate sources per target: one MXU op against a constant selector
    aggt = jnp.dot(msg, ssel_ref[...], preferred_element_type=jnp.float32)  # [F, TI]

    # CFConv.lin2 -> act -> InteractionBlock.lin (all transposed, [H, TI])
    vt = _sp(jnp.dot(wc2t_ref[...], aggt, preferred_element_type=jnp.float32)
             + bc2t_ref[...])
    vt = jnp.dot(wlt_ref[...], vt, preferred_element_type=jnp.float32) + blt_ref[...]
    ht = ht_prev + vt
    ht_sc[...] = ht

    # TODO(synk): the RGINConv branch (`self.rgins`) of SchNet3 is not defined
    # in the provided source; that loop is omitted.

    @pl.when(l == n_blocks - 1)
    def _readout():
        hh = _sp(jnp.dot(wf1t_ref[...], ht, preferred_element_type=jnp.float32)
                 + bf1t_ref[...])             # [H/2, TI]
        y = (jnp.dot(wf2t_ref[...], hh, preferred_element_type=jnp.float32)
             + bf2_ref[...])                  # [1, TI] per-atom energies
        row = jnp.dot(y, boh_ref[...], preferred_element_type=jnp.float32)  # [1, M]
        out_ref[...] = jnp.broadcast_to(row, out_ref.shape)


# ------------------------------ wrapper -------------------------------------
def schnet3_forward(params, z, pos, batch, n_mols, *, ti=None):
    n = int(z.shape[0])
    if ti is None:
        # sweep upward on real workloads: per-step edge tile TE = ti*ti should
        # reach ~512-2048 lanes within the per-generation VMEM budget.
        base = min(n, 128)
        ti = max(8, base - (base % 8))
    assert n % ti == 0 and ti % 8 == 0, "pad atoms to a multiple of the row tile"
    nt = n // ti
    te = ti * ti

    # row tiles must align with molecule boundaries: cross-tile edges are
    # dropped (all of them are masked-zero when alignment holds).
    batch_np = np.asarray(batch)
    for m in range(n_mols):
        idx = np.where(batch_np == m)[0]
        if idx.size:
            assert idx.min() // ti == idx.max() // ti, \
                "molecules must not straddle row-tile boundaries"
    # TODO(synk): for large / ragged molecules replace the dense per-tile
    # all-pairs block with scalar-prefetched neighbor lists
    # (PrefetchScalarGridSpec + SMEM index tables).

    h0 = params["embedding"][z].astype(jnp.float32)                     # [N, H]
    h0t = jnp.stack([h0[t * ti:(t + 1) * ti].T for t in range(nt)], 0)  # [nt, H, TI]

    diff = pos[:, None, :] - pos[None, :, :]
    dist2d = jnp.sqrt(jnp.sum(diff * diff, axis=-1))
    mask2d = ((batch[:, None] == batch[None, :]) & (~jnp.eye(n, dtype=bool))
              & (dist2d <= CUTOFF))
    cfac2d = (mask2d * 0.5 * (jnp.cos(dist2d * (math.pi / CUTOFF)) + 1.0)
              ).astype(jnp.float32)

    def diag_blocks(a):          # [nt, 1, TE]: lane-dense per-tile blocks
        return jnp.stack([a[t * ti:(t + 1) * ti, t * ti:(t + 1) * ti]
                          .reshape(1, te) for t in range(nt)], 0)
    dflat = diag_blocks(dist2d.astype(jnp.float32))
    cflat = diag_blocks(cfac2d)

    offset = jnp.linspace(0.0, CUTOFF, GAUSS, dtype=jnp.float32)
    coeff = -0.5 / float(CUTOFF / (GAUSS - 1)) ** 2
    mu = offset.reshape(GAUSS, 1)                                        # [G, 1]

    # constant 0/1 matrices over flattened edges e = i_local*TI + j_local
    e = np.arange(te)
    rrep = jnp.asarray((e[None, :] % ti) == np.arange(ti)[:, None], jnp.float32)   # [TI,TE]
    ssel = jnp.asarray((e[:, None] // ti) == np.arange(ti)[None, :], jnp.float32)  # [TE,TI]

    boh = (batch[:, None] == jnp.arange(n_mols)[None, :]).astype(jnp.float32)      # [N, M]

    # transposed weights; ShiftedSoftplus' -log(2) folded into downstream biases
    tr = lambda a: jnp.transpose(a, (0, 2, 1))
    wm1t, bm1t = tr(params["wm1"]), tr(params["bm1"])
    wm2t = tr(params["wm2"])
    bm2t = (params["bm2"][:, 0, :] - LOG2 * params["wm2"].sum(axis=1))[:, :, None]
    wc1t = tr(params["wc1"])
    wc2t, bc2t = tr(params["wc2"]), tr(params["bc2"])
    wlt = tr(params["wl"])
    blt = (params["bl"][:, 0, :] - LOG2 * params["wl"].sum(axis=1))[:, :, None]
    wf1t, bf1t = params["wf1"].T, params["bf1"].T
    wf2t = params["wf2"].T
    bf2a = params["bf2"] - LOG2 * params["wf2"].sum(axis=0, keepdims=True)   # [1, 1]

    def wblk(shape):    # per-interaction-block weight slice
        return pl.BlockSpec((None,) + shape, lambda t, l: (l, 0, 0))

    def const(shape):   # whole array, resident for the full grid
        return pl.BlockSpec(shape, lambda t, l: (0,) * len(shape))

    in_specs = [
        pl.BlockSpec((None, 1, te), lambda t, l: (t, 0, 0)),             # dflat
        pl.BlockSpec((None, 1, te), lambda t, l: (t, 0, 0)),             # cflat
        pl.BlockSpec((None, HIDDEN, ti), lambda t, l: (t, 0, 0)),        # h0t
        pl.BlockSpec((ti, n_mols), lambda t, l: (t, 0)),                 # boh
        const((GAUSS, 1)),                                               # mu
        const((ti, te)), const((te, ti)),                                # rrep, ssel
        wblk((FILTERS, GAUSS)), wblk((FILTERS, 1)),                      # wm1t, bm1t
        wblk((FILTERS, FILTERS)), wblk((FILTERS, 1)),                    # wm2t, bm2t
        wblk((FILTERS, HIDDEN)),                                         # wc1t
        wblk((HIDDEN, FILTERS)), wblk((HIDDEN, 1)),                      # wc2t, bc2t
        wblk((HIDDEN, HIDDEN)), wblk((HIDDEN, 1)),                       # wlt, blt
        const((HIDDEN // 2, HIDDEN)), const((HIDDEN // 2, 1)),           # wf1t, bf1t
        const((1, HIDDEN // 2)), const((1, 1)),                          # wf2t, bf2
    ]

    ops = (dflat, cflat, h0t, boh, mu, rrep, ssel,
           wm1t, bm1t, wm2t, bm2t, wc1t, wc2t, bc2t, wlt, blt,
           wf1t, bf1t, wf2t, bf2a)

    # advisory cost estimate
    F, G, H = FILTERS, GAUSS, HIDDEN
    per_step_mm = 2 * (F * H * ti + F * ti * te + G * F * te + F * F * te
                       + F * te * ti + H * F * ti + H * H * ti)
    per_step_tr = G * te + 2 * F * te + 2 * H * ti
    readout_mm = 2 * ((H // 2) * H * ti + (H // 2) * ti + ti * n_mols)
    readout_tr = 2 * (H // 2) * ti
    flops = nt * (N_INTER * per_step_mm + readout_mm)
    transc = nt * (N_INTER * per_step_tr + readout_tr)
    bytes_acc = 4 * int(sum(int(np.prod(o.shape)) for o in ops) + nt * 8 * n_mols)

    out = pl.pallas_call(
        partial(_schnet_kernel, coeff=coeff, n_blocks=N_INTER),
        out_shape=jax.ShapeDtypeStruct((nt, 8, n_mols), jnp.float32),
        grid_spec=pltpu.PrefetchScalarGridSpec(
            num_scalar_prefetch=0,
            grid=(nt, N_INTER),                      # (row tile, interaction block)
            in_specs=in_specs,
            out_specs=pl.BlockSpec((None, 8, n_mols), lambda t, l: (t, 0, 0)),
            scratch_shapes=[pltpu.VMEM((HIDDEN, ti), jnp.float32)],      # h state
        ),
        compiler_params=pltpu.CompilerParams(
            # tiles are molecule-aligned & independent -> parallel tile axis
            # (both TensorCores on v7x); the block axis carries h in scratch.
            dimension_semantics=("parallel", "arbitrary"),
            vmem_limit_bytes=32 * 1024 * 1024,       # re-derive per TPU generation
        ),
        cost_estimate=pl.CostEstimate(flops=int(flops),
                                      transcendentals=int(transc),
                                      bytes_accessed=int(bytes_acc)),
    )(*ops)
    return out[:, 0, :].sum(axis=0)                                      # [M]


# ------------------------ pure-JAX reference (check) -------------------------
def schnet3_reference(params, z, pos, batch, n_mols):
    n = z.shape[0]
    h = params["embedding"][z]
    diff = pos[:, None, :] - pos[None, :, :]
    dist2d = jnp.sqrt(jnp.sum(diff * diff, axis=-1))
    mask2d = ((batch[:, None] == batch[None, :]) & (~jnp.eye(n, dtype=bool))
              & (dist2d <= CUTOFF)).astype(jnp.float32)
    offset = jnp.linspace(0.0, CUTOFF, GAUSS, dtype=jnp.float32)
    coeff = -0.5 / float(CUTOFF / (GAUSS - 1)) ** 2
    d = dist2d.reshape(n * n, 1)
    ea = jnp.exp(coeff * (d - offset[None, :]) ** 2)
    cfac = mask2d.reshape(n * n, 1) * 0.5 * (jnp.cos(d * math.pi / CUTOFF) + 1.0)
    for l in range(N_INTER):
        x1 = h @ params["wc1"][l]
        t = _ssp(ea @ params["wm1"][l] + params["bm1"][l])
        wfil = (t @ params["wm2"][l] + params["bm2"][l]) * cfac
        agg = jnp.sum(wfil.reshape(n, n, -1) * x1[None, :, :], axis=1)
        v = _ssp(agg @ params["wc2"][l] + params["bc2"][l])
        v = v @ params["wl"][l] + params["bl"][l]
        h = h + v
    hh = _ssp(h @ params["wf1"] + params["bf1"])
    y = hh @ params["wf2"] + params["bf2"]
    boh = (batch[None, :] == jnp.arange(n_mols)[:, None]).astype(jnp.float32)
    return (boh @ y)[:, 0]


# ----------------------------- parameter init --------------------------------
def _xavier(key, fan_in, fan_out):
    bound = math.sqrt(6.0 / (fan_in + fan_out))
    return jax.random.uniform(key, (fan_in, fan_out), jnp.float32, -bound, bound)


def init_params(key):
    keys = jax.random.split(key, 64)
    ki = iter(keys)
    emb = jax.random.normal(next(ki), (100, HIDDEN), jnp.float32)
    emb = emb.at[0].set(0.0)                     # padding_idx = 0

    def stack(fn):
        return jnp.stack([fn(next(ki)) for _ in range(N_INTER)], axis=0)

    return {
        "embedding": emb,
        "wm1": stack(lambda k: _xavier(k, GAUSS, FILTERS)),
        "bm1": jnp.zeros((N_INTER, 1, FILTERS), jnp.float32),
        "wm2": stack(lambda k: _xavier(k, FILTERS, FILTERS)),
        "bm2": jnp.zeros((N_INTER, 1, FILTERS), jnp.float32),
        "wc1": stack(lambda k: _xavier(k, HIDDEN, FILTERS)),
        "wc2": stack(lambda k: _xavier(k, FILTERS, HIDDEN)),
        "bc2": jnp.zeros((N_INTER, 1, HIDDEN), jnp.float32),
        "wl": stack(lambda k: _xavier(k, HIDDEN, HIDDEN)),
        "bl": jnp.zeros((N_INTER, 1, HIDDEN), jnp.float32),
        "wf1": _xavier(next(ki), HIDDEN, HIDDEN // 2),
        "bf1": jnp.zeros((1, HIDDEN // 2), jnp.float32),
        "wf2": _xavier(next(ki), HIDDEN // 2, 1),
        "bf2": jnp.zeros((1, 1), jnp.float32),
    }


# --------------------------------- main --------------------------------------
if __name__ == "__main__":
    key = jax.random.PRNGKey(0)
    k_par, k_z, k_pos, k_bt = jax.random.split(key, 4)

    n_mols = 4
    atoms_per_mol = 8
    n_atoms = n_mols * atoms_per_mol

    params = init_params(k_par)

    z = jax.random.randint(k_z, (n_atoms,), 1, 10)                        # atomic numbers
    pos = jax.random.uniform(k_pos, (n_atoms, 3), jnp.float32, 0.0, 4.0)  # coordinates
    batch = jnp.repeat(jnp.arange(n_mols), atoms_per_mol)

    # bond inputs exist in the module signature but feed only the (undefined)
    # RGINConv branch, which is skipped here.
    n_bonds = 24
    bond_index = jax.random.randint(k_bt, (2, n_bonds), 0, n_atoms)
    bond_type = jax.random.randint(k_bt, (n_bonds,), 0, 30)

    # ti=16: two molecule-aligned row tiles (TE = 256 lanes/step); sweep ti
    # upward on realistic inputs within the per-generation VMEM budget.
    out = schnet3_forward(params, z, pos, batch, n_mols, ti=16)
    out = jax.block_until_ready(out)

    ref = schnet3_reference(params, z, pos, batch, n_mols)
    assert out.shape == (n_mols,)
    assert jnp.allclose(out, ref, rtol=1e-3, atol=1e-3), (out, ref)

    print("KERNEL_OK")
</pallas_src>

<mosaic_0001>
module attributes {stable_mosaic.version = 11 : i64} {
  func.func @_schnet_kernel(%arg0: i32, %arg1: i32, %arg2: memref<1x1x256xf32, #tpu.memory_space<vmem>>, %arg3: memref<1x1x256xf32, #tpu.memory_space<vmem>>, %arg4: memref<1x32x16xf32, #tpu.memory_space<vmem>>, %arg5: memref<16x4xf32, #tpu.memory_space<vmem>>, %arg6: memref<16x1xf32, #tpu.memory_space<vmem>>, %arg7: memref<16x256xf32, #tpu.memory_space<vmem>>, %arg8: memref<256x16xf32, #tpu.memory_space<vmem>>, %arg9: memref<1x32x16xf32, #tpu.memory_space<vmem>>, %arg10: memref<1x32x1xf32, #tpu.memory_space<vmem>>, %arg11: memref<1x32x32xf32, #tpu.memory_space<vmem>>, %arg12: memref<1x32x1xf32, #tpu.memory_space<vmem>>, %arg13: memref<1x32x32xf32, #tpu.memory_space<vmem>>, %arg14: memref<1x32x32xf32, #tpu.memory_space<vmem>>, %arg15: memref<1x32x1xf32, #tpu.memory_space<vmem>>, %arg16: memref<1x32x32xf32, #tpu.memory_space<vmem>>, %arg17: memref<1x32x1xf32, #tpu.memory_space<vmem>>, %arg18: memref<16x32xf32, #tpu.memory_space<vmem>>, %arg19: memref<16x1xf32, #tpu.memory_space<vmem>>, %arg20: memref<1x16xf32, #tpu.memory_space<vmem>>, %arg21: memref<1x1xf32, #tpu.memory_space<vmem>>, %arg22: memref<1x8x4xf32, #tpu.memory_space<vmem>>, %arg23: memref<32x16xf32, #tpu.memory_space<vmem>>) attributes {dimension_semantics = [#tpu.dimension_semantics<parallel>, #tpu.dimension_semantics<arbitrary>], iteration_bounds = array<i64: 2, 3>, scalar_prefetch = 0 : i64, scratch_operands = 1 : i64, tpu.core_type = #tpu.core_type<tc>, window_params = [{transform_indices = @transform_0, window_bounds = array<i64: 1, 1, 256>}, {transform_indices = @transform_1, window_bounds = array<i64: 1, 1, 256>}, {transform_indices = @transform_2, window_bounds = array<i64: 1, 32, 16>}, {transform_indices = @transform_3, window_bounds = array<i64: 16, 4>}, {pipeline_mode = #tpu.pipeline_mode<synchronous>, transform_indices = @transform_4, window_bounds = array<i64: 16, 1>}, {pipeline_mode = #tpu.pipeline_mode<synchronous>, transform_indices = @transform_5, window_bounds = array<i64: 16, 256>}, {pipeline_mode = #tpu.pipeline_mode<synchronous>, transform_indices = @transform_6, window_bounds = array<i64: 256, 16>}, {transform_indices = @transform_7, window_bounds = array<i64: 1, 32, 16>}, {transform_indices = @transform_8, window_bounds = array<i64: 1, 32, 1>}, {transform_indices = @transform_9, window_bounds = array<i64: 1, 32, 32>}, {transform_indices = @transform_10, window_bounds = array<i64: 1, 32, 1>}, {transform_indices = @transform_11, window_bounds = array<i64: 1, 32, 32>}, {transform_indices = @transform_12, window_bounds = array<i64: 1, 32, 32>}, {transform_indices = @transform_13, window_bounds = array<i64: 1, 32, 1>}, {transform_indices = @transform_14, window_bounds = array<i64: 1, 32, 32>}, {transform_indices = @transform_15, window_bounds = array<i64: 1, 32, 1>}, {pipeline_mode = #tpu.pipeline_mode<synchronous>, transform_indices = @transform_16, window_bounds = array<i64: 16, 32>}, {pipeline_mode = #tpu.pipeline_mode<synchronous>, transform_indices = @transform_17, window_bounds = array<i64: 16, 1>}, {pipeline_mode = #tpu.pipeline_mode<synchronous>, transform_indices = @transform_18, window_bounds = array<i64: 1, 16>}, {pipeline_mode = #tpu.pipeline_mode<synchronous>, transform_indices = @transform_19, window_bounds = array<i64: 1, 1>}, {transform_indices = @transform_20, window_bounds = array<i64: 1, 8, 4>}]} {
    %c0_i32 = arith.constant 0 : i32
    %0 = arith.cmpi eq, %arg1, %c0_i32 : i32
    %c0 = arith.constant 0 : index
    %c0_0 = arith.constant 0 : index
    %c0_1 = arith.constant 0 : index
    %1 = vector.load %arg4[%c0, %c0_0, %c0_1] : memref<1x32x16xf32, #tpu.memory_space<vmem>>, vector<1x32x16xf32>
    %2 = vector.shape_cast %1 : vector<1x32x16xf32> to vector<32x16xf32>
    %c0_2 = arith.constant 0 : index
    %c0_3 = arith.constant 0 : index
    %3 = vector.load %arg23[%c0_2, %c0_3] : memref<32x16xf32, #tpu.memory_space<vmem>>, vector<32x16xf32>
    %4 = arith.select %0, %2, %3 : vector<32x16xf32>
    %c0_4 = arith.constant 0 : index
    %c0_5 = arith.constant 0 : index
    %c0_6 = arith.constant 0 : index
    %5 = vector.load %arg13[%c0_4, %c0_5, %c0_6] : memref<1x32x32xf32, #tpu.memory_space<vmem>>, vector<1x32x32xf32>
    %6 = vector.shape_cast %5 : vector<1x32x32xf32> to vector<32x32xf32>
    %cst = arith.constant dense<0.000000e+00> : vector<32x16xf32>
    %7 = tpu.matmul %6, %4, %cst {dimension_numbers = #tpu.dot_dimension_numbers<[1], [0], [0], [1], [0, 0, 1, 1], [], []>} : vector<32x32xf32>, vector<32x16xf32>, vector<32x16xf32> -> vector<32x16xf32>
    %c0_7 = arith.constant 0 : index
    %c0_8 = arith.constant 0 : index
    %8 = vector.load %arg7[%c0_7, %c0_8] : memref<16x256xf32, #tpu.memory_space<vmem>>, vector<16x256xf32>
    %cst_9 = arith.constant dense<0.000000e+00> : vector<32x256xf32>
    %9 = tpu.matmul %7, %8, %cst_9 {dimension_numbers = #tpu.dot_dimension_numbers<[1], [0], [0], [1], [0, 0, 1, 1], [], []>} : vector<32x16xf32>, vector<16x256xf32>, vector<32x256xf32> -> vector<32x256xf32>
    %c0_10 = arith.constant 0 : index
    %c0_11 = arith.constant 0 : index
    %c0_12 = arith.constant 0 : index
    %10 = vector.load %arg2[%c0_10, %c0_11, %c0_12] : memref<1x1x256xf32, #tpu.memory_space<vmem>>, vector<1x1x256xf32>
    %11 = vector.shape_cast %10 : vector<1x1x256xf32> to vector<1x256xf32>
    %c0_13 = arith.constant 0 : index
    %c0_14 = arith.constant 0 : index
    %12 = vector.load %arg6[%c0_13, %c0_14] : memref<16x1xf32, #tpu.memory_space<vmem>>, vector<16x1xf32>
    %13 = vector.broadcast %11 : vector<1x256xf32> to vector<16x256xf32>
    %14 = vector.broadcast %12 : vector<16x1xf32> to vector<16x256xf32>
    %15 = arith.subf %13, %14 : vector<16x256xf32>
    %cst_15 = arith.constant -1.125000e+00 : f32
    %16 = vector.broadcast %cst_15 : f32 to vector<16x256xf32>
    %17 = arith.mulf %16, %15 : vector<16x256xf32>
    %18 = arith.mulf %17, %15 : vector<16x256xf32>
    %19 = math.exp %18 : vector<16x256xf32>
    %c0_16 = arith.constant 0 : index
    %c0_17 = arith.constant 0 : index
    %c0_18 = arith.constant 0 : index
    %20 = vector.load %arg9[%c0_16, %c0_17, %c0_18] : memref<1x32x16xf32, #tpu.memory_space<vmem>>, vector<1x32x16xf32>
    %21 = vector.shape_cast %20 : vector<1x32x16xf32> to vector<32x16xf32>
    %cst_19 = arith.constant dense<0.000000e+00> : vector<32x256xf32>
    %22 = tpu.matmul %21, %19, %cst_19 {dimension_numbers = #tpu.dot_dimension_numbers<[1], [0], [0], [1], [0, 0, 1, 1], [], []>} : vector<32x16xf32>, vector<16x256xf32>, vector<32x256xf32> -> vector<32x256xf32>
    %c0_20 = arith.constant 0 : index
    %c0_21 = arith.constant 0 : index
    %c0_22 = arith.constant 0 : index
    %23 = vector.load %arg10[%c0_20, %c0_21, %c0_22] : memref<1x32x1xf32, #tpu.memory_space<vmem>>, vector<1x32x1xf32>
    %24 = vector.shape_cast %23 : vector<1x32x1xf32> to vector<32x1xf32>
    %25 = vector.broadcast %24 : vector<32x1xf32> to vector<32x256xf32>
    %26 = arith.addf %22, %25 : vector<32x256xf32>
    %cst_23 = arith.constant 0.000000e+00 : f32
    %27 = vector.broadcast %cst_23 : f32 to vector<32x256xf32>
    %28 = arith.maximumf %26, %27 : vector<32x256xf32>
    %29 = math.absf %26 : vector<32x256xf32>
    %cst_24 = arith.constant 0.000000e+00 : f32
    %30 = vector.broadcast %cst_24 : f32 to vector<32x256xf32>
    %31 = arith.subf %30, %29 : vector<32x256xf32>
    %32 = math.exp %31 : vector<32x256xf32>
    %33 = math.log1p %32 : vector<32x256xf32>
    %34 = arith.addf %28, %33 : vector<32x256xf32>
    %c0_25 = arith.constant 0 : index
    %c0_26 = arith.constant 0 : index
    %c0_27 = arith.constant 0 : index
    %35 = vector.load %arg11[%c0_25, %c0_26, %c0_27] : memref<1x32x32xf32, #tpu.memory_space<vmem>>, vector<1x32x32xf32>
    %36 = vector.shape_cast %35 : vector<1x32x32xf32> to vector<32x32xf32>
    %cst_28 = arith.constant dense<0.000000e+00> : vector<32x256xf32>
    %37 = tpu.matmul %36, %34, %cst_28 {dimension_numbers = #tpu.dot_dimension_numbers<[1], [0], [0], [1], [0, 0, 1, 1], [], []>} : vector<32x32xf32>, vector<32x256xf32>, vector<32x256xf32> -> vector<32x256xf32>
    %c0_29 = arith.constant 0 : index
    %c0_30 = arith.constant 0 : index
    %c0_31 = arith.constant 0 : index
    %38 = vector.load %arg12[%c0_29, %c0_30, %c0_31] : memref<1x32x1xf32, #tpu.memory_space<vmem>>, vector<1x32x1xf32>
    %39 = vector.shape_cast %38 : vector<1x32x1xf32> to vector<32x1xf32>
    %40 = vector.broadcast %39 : vector<32x1xf32> to vector<32x256xf32>
    %41 = arith.addf %37, %40 : vector<32x256xf32>
    %42 = arith.mulf %41, %9 : vector<32x256xf32>
    %c0_32 = arith.constant 0 : index
    %c0_33 = arith.constant 0 : index
    %c0_34 = arith.constant 0 : index
    %43 = vector.load %arg3[%c0_32, %c0_33, %c0_34] : memref<1x1x256xf32, #tpu.memory_space<vmem>>, vector<1x1x256xf32>
    %44 = vector.shape_cast %43 : vector<1x1x256xf32> to vector<1x256xf32>
    %45 = vector.broadcast %44 : vector<1x256xf32> to vector<32x256xf32>
    %46 = arith.mulf %42, %45 : vector<32x256xf32>
    %c0_35 = arith.constant 0 : index
    %c0_36 = arith.constant 0 : index
    %47 = vector.load %arg8[%c0_35, %c0_36] : memref<256x16xf32, #tpu.memory_space<vmem>>, vector<256x16xf32>
    %cst_37 = arith.constant dense<0.000000e+00> : vector<32x16xf32>
    %48 = tpu.matmul %46, %47, %cst_37 {dimension_numbers = #tpu.dot_dimension_numbers<[1], [0], [0], [1], [0, 0, 1, 1], [], []>} : vector<32x256xf32>, vector<256x16xf32>, vector<32x16xf32> -> vector<32x16xf32>
    %c0_38 = arith.constant 0 : index
    %c0_39 = arith.constant 0 : index
    %c0_40 = arith.constant 0 : index
    %49 = vector.load %arg14[%c0_38, %c0_39, %c0_40] : memref<1x32x32xf32, #tpu.memory_space<vmem>>, vector<1x32x32xf32>
    %50 = vector.shape_cast %49 : vector<1x32x32xf32> to vector<32x32xf32>
    %cst_41 = arith.constant dense<0.000000e+00> : vector<32x16xf32>
    %51 = tpu.matmul %50, %48, %cst_41 {dimension_numbers = #tpu.dot_dimension_numbers<[1], [0], [0], [1], [0, 0, 1, 1], [], []>} : vector<32x32xf32>, vector<32x16xf32>, vector<32x16xf32> -> vector<32x16xf32>
    %c0_42 = arith.constant 0 : index
    %c0_43 = arith.constant 0 : index
    %c0_44 = arith.constant 0 : index
    %52 = vector.load %arg15[%c0_42, %c0_43, %c0_44] : memref<1x32x1xf32, #tpu.memory_space<vmem>>, vector<1x32x1xf32>
    %53 = vector.shape_cast %52 : vector<1x32x1xf32> to vector<32x1xf32>
    %54 = vector.broadcast %53 : vector<32x1xf32> to vector<32x16xf32>
    %55 = arith.addf %51, %54 : vector<32x16xf32>
    %cst_45 = arith.constant 0.000000e+00 : f32
    %56 = vector.broadcast %cst_45 : f32 to vector<32x16xf32>
    %57 = arith.maximumf %55, %56 : vector<32x16xf32>
    %58 = math.absf %55 : vector<32x16xf32>
    %cst_46 = arith.constant 0.000000e+00 : f32
    %59 = vector.broadcast %cst_46 : f32 to vector<32x16xf32>
    %60 = arith.subf %59, %58 : vector<32x16xf32>
    %61 = math.exp %60 : vector<32x16xf32>
    %62 = math.log1p %61 : vector<32x16xf32>
    %63 = arith.addf %57, %62 : vector<32x16xf32>
    %c0_47 = arith.constant 0 : index
    %c0_48 = arith.constant 0 : index
    %c0_49 = arith.constant 0 : index
    %64 = vector.load %arg16[%c0_47, %c0_48, %c0_49] : memref<1x32x32xf32, #tpu.memory_space<vmem>>, vector<1x32x32xf32>
    %65 = vector.shape_cast %64 : vector<1x32x32xf32> to vector<32x32xf32>
    %cst_50 = arith.constant dense<0.000000e+00> : vector<32x16xf32>
    %66 = tpu.matmul %65, %63, %cst_50 {dimension_numbers = #tpu.dot_dimension_numbers<[1], [0], [0], [1], [0, 0, 1, 1], [], []>} : vector<32x32xf32>, vector<32x16xf32>, vector<32x16xf32> -> vector<32x16xf32>
    %c0_51 = arith.constant 0 : index
    %c0_52 = arith.constant 0 : index
    %c0_53 = arith.constant 0 : index
    %67 = vector.load %arg17[%c0_51, %c0_52, %c0_53] : memref<1x32x1xf32, #tpu.memory_space<vmem>>, vector<1x32x1xf32>
    %68 = vector.shape_cast %67 : vector<1x32x1xf32> to vector<32x1xf32>
    %69 = vector.broadcast %68 : vector<32x1xf32> to vector<32x16xf32>
    %70 = arith.addf %66, %69 : vector<32x16xf32>
    %71 = arith.addf %4, %70 : vector<32x16xf32>
    %c0_54 = arith.constant 0 : index
    %c0_55 = arith.constant 0 : index
    %72 = vector.load %arg23[%c0_54, %c0_55] : memref<32x16xf32, #tpu.memory_space<vmem>>, vector<32x16xf32>
    tpu.vector_store %arg23[%c0_54, %c0_55], %71 {strides = array<i32>} : memref<32x16xf32, #tpu.memory_space<vmem>>, vector<32x16xf32>,
    %c2_i32 = arith.constant 2 : i32
    %73 = arith.cmpi eq, %arg1, %c2_i32 : i32
    %74 = arith.extui %73 : i1 to i32
    %c0_i32_56 = arith.constant 0 : i32
    %75 = arith.cmpi ne, %74, %c0_i32_56 : i32
    scf.if %75 {
      %c0_57 = arith.constant 0 : index
      %c0_58 = arith.constant 0 : index
      %76 = vector.load %arg18[%c0_57, %c0_58] : memref<16x32xf32, #tpu.memory_space<vmem>>, vector<16x32xf32>
      %cst_59 = arith.constant dense<0.000000e+00> : vector<16x16xf32>
      %77 = tpu.matmul %76, %71, %cst_59 {dimension_numbers = #tpu.dot_dimension_numbers<[1], [0], [0], [1], [0, 0, 1, 1], [], []>} : vector<16x32xf32>, vector<32x16xf32>, vector<16x16xf32> -> vector<16x16xf32>
      %c0_60 = arith.constant 0 : index
      %c0_61 = arith.constant 0 : index
      %78 = vector.load %arg19[%c0_60, %c0_61] : memref<16x1xf32, #tpu.memory_space<vmem>>, vector<16x1xf32>
      %79 = vector.broadcast %78 : vector<16x1xf32> to vector<16x16xf32>
      %80 = arith.addf %77, %79 : vector<16x16xf32>
      %cst_62 = arith.constant 0.000000e+00 : f32
      %81 = vector.broadcast %cst_62 : f32 to vector<16x16xf32>
      %82 = arith.maximumf %80, %81 : vector<16x16xf32>
      %83 = math.absf %80 : vector<16x16xf32>
      %cst_63 = arith.constant 0.000000e+00 : f32
      %84 = vector.broadcast %cst_63 : f32 to vector<16x16xf32>
      %85 = arith.subf %84, %83 : vector<16x16xf32>
      %86 = math.exp %85 : vector<16x16xf32>
      %87 = math.log1p %86 : vector<16x16xf32>
      %88 = arith.addf %82, %87 : vector<16x16xf32>
      %c0_64 = arith.constant 0 : index
      %c0_65 = arith.constant 0 : index
      %89 = vector.load %arg20[%c0_64, %c0_65] : memref<1x16xf32, #tpu.memory_space<vmem>>, vector<1x16xf32>
      %cst_66 = arith.constant dense<0.000000e+00> : vector<1x16xf32>
      %90 = tpu.matmul %89, %88, %cst_66 {dimension_numbers = #tpu.dot_dimension_numbers<[1], [0], [0], [1], [0, 0, 1, 1], [], []>} : vector<1x16xf32>, vector<16x16xf32>, vector<1x16xf32> -> vector<1x16xf32>
      %c0_67 = arith.constant 0 : index
      %c0_68 = arith.constant 0 : index
      %91 = vector.load %arg21[%c0_67, %c0_68] : memref<1x1xf32, #tpu.memory_space<vmem>>, vector<1x1xf32>
      %92 = vector.broadcast %91 : vector<1x1xf32> to vector<1x16xf32>
      %93 = arith.addf %90, %92 : vector<1x16xf32>
      %c0_69 = arith.constant 0 : index
      %c0_70 = arith.constant 0 : index
      %94 = vector.load %arg5[%c0_69, %c0_70] : memref<16x4xf32, #tpu.memory_space<vmem>>, vector<16x4xf32>
      %cst_71 = arith.constant dense<0.000000e+00> : vector<1x4xf32>
      %95 = tpu.matmul %93, %94, %cst_71 {dimension_numbers = #tpu.dot_dimension_numbers<[1], [0], [0], [1], [0, 0, 1, 1], [], []>} : vector<1x16xf32>, vector<16x4xf32>, vector<1x4xf32> -> vector<1x4xf32>
      %96 = vector.shape_cast %95 : vector<1x4xf32> to vector<1x4xf32>
      %97 = vector.broadcast %96 : vector<1x4xf32> to vector<8x4xf32>
      %c0_72 = arith.constant 0 : index
      %c0_73 = arith.constant 0 : index
      %c0_74 = arith.constant 0 : index
      %98 = vector.load %arg22[%c0_72, %c0_73, %c0_74] : memref<1x8x4xf32, #tpu.memory_space<vmem>>, vector<1x8x4xf32>
      %99 = vector.shape_cast %98 : vector<1x8x4xf32> to vector<8x4xf32>
      %100 = vector.shape_cast %97 : vector<8x4xf32> to vector<1x8x4xf32>
      tpu.vector_store %arg22[%c0_72, %c0_73, %c0_74], %100 {strides = array<i32>} : memref<1x8x4xf32, #tpu.memory_space<vmem>>, vector<1x8x4xf32>,
    } else {
    }
    return
  }
  func.func @transform_0(%arg0: i32, %arg1: i32) -> (i32, i32, i32) {
    %c0_i32 = arith.constant 0 : i32
    %c0_i32_0 = arith.constant 0 : i32
    %c0_i32_1 = arith.constant 0 : i32
    return %arg0, %c0_i32, %c0_i32_0 : i32, i32, i32
  }
  func.func @transform_1(%arg0: i32, %arg1: i32) -> (i32, i32, i32) {
    %c0_i32 = arith.constant 0 : i32
    %c0_i32_0 = arith.constant 0 : i32
    %c0_i32_1 = arith.constant 0 : i32
    return %arg0, %c0_i32, %c0_i32_0 : i32, i32, i32
  }
  func.func @transform_2(%arg0: i32, %arg1: i32) -> (i32, i32, i32) {
    %c0_i32 = arith.constant 0 : i32
    %c0_i32_0 = arith.constant 0 : i32
    %c0_i32_1 = arith.constant 0 : i32
    return %arg0, %c0_i32, %c0_i32_0 : i32, i32, i32
  }
  func.func @transform_3(%arg0: i32, %arg1: i32) -> (i32, i32) {
    %c0_i32 = arith.constant 0 : i32
    %c0_i32_0 = arith.constant 0 : i32
    return %arg0, %c0_i32 : i32, i32
  }
  func.func @transform_4(%arg0: i32, %arg1: i32) -> (i32, i32) {
    %c0_i32 = arith.constant 0 : i32
    %c0_i32_0 = arith.constant 0 : i32
    %c0_i32_1 = arith.constant 0 : i32
    return %c0_i32, %c0_i32_0 : i32, i32
  }
  func.func @transform_5(%arg0: i32, %arg1: i32) -> (i32, i32) {
    %c0_i32 = arith.constant 0 : i32
    %c0_i32_0 = arith.constant 0 : i32
    %c0_i32_1 = arith.constant 0 : i32
    return %c0_i32, %c0_i32_0 : i32, i32
  }
  func.func @transform_6(%arg0: i32, %arg1: i32) -> (i32, i32) {
    %c0_i32 = arith.constant 0 : i32
    %c0_i32_0 = arith.constant 0 : i32
    %c0_i32_1 = arith.constant 0 : i32
    return %c0_i32, %c0_i32_0 : i32, i32
  }
  func.func @transform_7(%arg0: i32, %arg1: i32) -> (i32, i32, i32) {
    %c0_i32 = arith.constant 0 : i32
    %c0_i32_0 = arith.constant 0 : i32
    %c0_i32_1 = arith.constant 0 : i32
    return %arg1, %c0_i32, %c0_i32_0 : i32, i32, i32
  }
  func.func @transform_8(%arg0: i32, %arg1: i32) -> (i32, i32, i32) {
    %c0_i32 = arith.constant 0 : i32
    %c0_i32_0 = arith.constant 0 : i32
    %c0_i32_1 = arith.constant 0 : i32
    return %arg1, %c0_i32, %c0_i32_0 : i32, i32, i32
  }
  func.func @transform_9(%arg0: i32, %arg1: i32) -> (i32, i32, i32) {
    %c0_i32 = arith.constant 0 : i32
    %c0_i32_0 = arith.constant 0 : i32
    %c0_i32_1 = arith.constant 0 : i32
    return %arg1, %c0_i32, %c0_i32_0 : i32, i32, i32
  }
  func.func @transform_10(%arg0: i32, %arg1: i32) -> (i32, i32, i32) {
    %c0_i32 = arith.constant 0 : i32
    %c0_i32_0 = arith.constant 0 : i32
    %c0_i32_1 = arith.constant 0 : i32
    return %arg1, %c0_i32, %c0_i32_0 : i32, i32, i32
  }
  func.func @transform_11(%arg0: i32, %arg1: i32) -> (i32, i32, i32) {
    %c0_i32 = arith.constant 0 : i32
    %c0_i32_0 = arith.constant 0 : i32
    %c0_i32_1 = arith.constant 0 : i32
    return %arg1, %c0_i32, %c0_i32_0 : i32, i32, i32
  }
  func.func @transform_12(%arg0: i32, %arg1: i32) -> (i32, i32, i32) {
    %c0_i32 = arith.constant 0 : i32
    %c0_i32_0 = arith.constant 0 : i32
    %c0_i32_1 = arith.constant 0 : i32
    return %arg1, %c0_i32, %c0_i32_0 : i32, i32, i32
  }
  func.func @transform_13(%arg0: i32, %arg1: i32) -> (i32, i32, i32) {
    %c0_i32 = arith.constant 0 : i32
    %c0_i32_0 = arith.constant 0 : i32
    %c0_i32_1 = arith.constant 0 : i32
    return %arg1, %c0_i32, %c0_i32_0 : i32, i32, i32
  }
  func.func @transform_14(%arg0: i32, %arg1: i32) -> (i32, i32, i32) {
    %c0_i32 = arith.constant 0 : i32
    %c0_i32_0 = arith.constant 0 : i32
    %c0_i32_1 = arith.constant 0 : i32
    return %arg1, %c0_i32, %c0_i32_0 : i32, i32, i32
  }
  func.func @transform_15(%arg0: i32, %arg1: i32) -> (i32, i32, i32) {
    %c0_i32 = arith.constant 0 : i32
    %c0_i32_0 = arith.constant 0 : i32
    %c0_i32_1 = arith.constant 0 : i32
    return %arg1, %c0_i32, %c0_i32_0 : i32, i32, i32
  }
  func.func @transform_16(%arg0: i32, %arg1: i32) -> (i32, i32) {
    %c0_i32 = arith.constant 0 : i32
    %c0_i32_0 = arith.constant 0 : i32
    %c0_i32_1 = arith.constant 0 : i32
    return %c0_i32, %c0_i32_0 : i32, i32
  }
  func.func @transform_17(%arg0: i32, %arg1: i32) -> (i32, i32) {
    %c0_i32 = arith.constant 0 : i32
    %c0_i32_0 = arith.constant 0 : i32
    %c0_i32_1 = arith.constant 0 : i32
    return %c0_i32, %c0_i32_0 : i32, i32
  }
  func.func @transform_18(%arg0: i32, %arg1: i32) -> (i32, i32) {
    %c0_i32 = arith.constant 0 : i32
    %c0_i32_0 = arith.constant 0 : i32
    %c0_i32_1 = arith.constant 0 : i32
    return %c0_i32, %c0_i32_0 : i32, i32
  }
  func.func @transform_19(%arg0: i32, %arg1: i32) -> (i32, i32) {
    %c0_i32 = arith.constant 0 : i32
    %c0_i32_0 = arith.constant 0 : i32
    %c0_i32_1 = arith.constant 0 : i32
    return %c0_i32, %c0_i32_0 : i32, i32
  }
  func.func @transform_20(%arg0: i32, %arg1: i32) -> (i32, i32, i32) {
    %c0_i32 = arith.constant 0 : i32
    %c0_i32_0 = arith.constant 0 : i32
    %c0_i32_1 = arith.constant 0 : i32
    return %arg0, %c0_i32, %c0_i32_0 : i32, i32, i32
  }
}

</mosaic_0001>

<llo_original>
// kernel: tpu_custom_call.1
$region0: #{tpu_custom_call.1}
  #allocation0 [shape = 'u32[]', space=smem, size = 0x4, offset = 0x4, fixed_abs, tag = 'smem constant byte address 0x4 - core index']
  #allocation1 [shape = 'u32[144,128]{1,0:T(1,128)}', space=vmem, size = 0x12000, scoped, tag = 'internal scratch']
  #allocation2 [shape = 'f32[32,16]{1,0:T(8,128)}', space=vmem, size = 0x4000, scoped, tag = 'scratch operand']
  #allocation3 [shape = 'f32[1,1]{1,0:T(1,128)S(1)}', space=vmem, size = 0x200, scoped, tag = 'scoped memory for tpu_custom_call.1']
  %s0 = inlined_call_operand.vmem [shape: f32[2,1,256], index: 0, kind: input, shape index: {}]
  %s1 = inlined_call_operand.vmem [shape: f32[2,1,256], index: 1, kind: input, shape index: {}]
  %s2 = inlined_call_operand.vmem [shape: f32[2,32,16], index: 2, kind: input, shape index: {}]
  %s3 = inlined_call_operand.vmem [shape: f32[32,4], index: 3, kind: input, shape index: {}]
  %s4 = inlined_call_operand.vmem [shape: f32[16,1], index: 4, kind: input, shape index: {}]
  %s5 = inlined_call_operand.vmem [shape: f32[16,256], index: 5, kind: input, shape index: {}]
  %s6 = inlined_call_operand.vmem [shape: f32[256,16], index: 6, kind: input, shape index: {}]
  %s7 = inlined_call_operand.vmem [shape: f32[3,32,16], index: 7, kind: input, shape index: {}]
  %s8 = inlined_call_operand.vmem [shape: f32[3,32,1], index: 8, kind: input, shape index: {}]
  %s9 = inlined_call_operand.vmem [shape: f32[3,32,32], index: 9, kind: input, shape index: {}]
  %s10 = inlined_call_operand.vmem [shape: f32[3,32,1], index: 10, kind: input, shape index: {}]
  %s11 = inlined_call_operand.vmem [shape: f32[3,32,32], index: 11, kind: input, shape index: {}]
  %s12 = inlined_call_operand.vmem [shape: f32[3,32,32], index: 12, kind: input, shape index: {}]
  %s13 = inlined_call_operand.vmem [shape: f32[3,32,1], index: 13, kind: input, shape index: {}]
  %s14 = inlined_call_operand.vmem [shape: f32[3,32,32], index: 14, kind: input, shape index: {}]
  %s15 = inlined_call_operand.vmem [shape: f32[3,32,1], index: 15, kind: input, shape index: {}]
  %s16 = inlined_call_operand.vmem [shape: f32[16,32], index: 16, kind: input, shape index: {}]
  %s17 = inlined_call_operand.vmem [shape: f32[16,1], index: 17, kind: input, shape index: {}]
  %s18 = inlined_call_operand.vmem [shape: f32[1,16], index: 18, kind: input, shape index: {}]
  %s19 = inlined_call_operand.<no memory space> [shape: f32[1,1], index: 19, kind: input, shape index: {}]
  %s20 = inlined_call_operand.vmem [shape: f32[2,8,4], index: 20, kind: output, shape index: {}]
  %s21 = sld [smem:[#allocation0]]
  $region117: #{tpu_custom_call.1} parent=0
    _
  %s23 = ssub.s32 1, %s21
  %s24 = scalar_select 0, %s23, %s21
  %v25 = vstv %s19
  %26 = vst [vmem:[#allocation3] sm:$0x1] %v25
  loop: start=0, step=1, limit=8
  $region2: #{tpu_custom_call.1} parent=0 // loop_pre_header
    _
  $region3: #{tpu_custom_call.1} parent=0 // loop_header
    %s28 = sphi 0, %s32
    %p29 = scmp.ge.s32.totalorder %s28, 8
    %s35 = sphi 0, %s47
    %s36 = sphi 0, %s43
    %s37 = sphi 0, %s35
    %s38 = sphi 0, %s36
    %s39 = sphi 0, %s37
    %s40 = sphi 0, %s38
    %s50 = sphi 0, %s52
    %s53 = sphi 0, %s50
    %s54 = sphi 0, %s53
    %s70 = sphi 0, %s54
    %s76 = sphi 0, %s78
    %s79 = sphi 0, %s76
    %s80 = sphi 0, %s79
    %s96 = sphi 0, %s80
    %s102 = sphi 0, %s104
    %s105 = sphi 0, %s102
    %s106 = sphi 0, %s105
    %s122 = sphi 0, %s106
    %s128 = sphi 0, %s130
    %s131 = sphi 0, %s128
    %s132 = sphi 0, %s131
    %s148 = sphi 0, %s132
    %s152 = sphi 0, %s152
    %s154 = sphi 0, %s152
    %s155 = sphi 0, %s154
    %s169 = sphi 0, %s155
    %s173 = sphi 0, %s173
    %s175 = sphi 0, %s173
    %s176 = sphi 0, %s175
    %s190 = sphi 0, %s176
    %s194 = sphi 0, %s194
    %s196 = sphi 0, %s194
    %s197 = sphi 0, %s196
    %s211 = sphi 0, %s197
    %s217 = sphi 0, %s219
    %s220 = sphi 0, %s217
    %s221 = sphi 0, %s220
    %s237 = sphi 0, %s221
    %s243 = sphi 0, %s245
    %s246 = sphi 0, %s243
    %s247 = sphi 0, %s246
    %s263 = sphi 0, %s247
    %s269 = sphi 0, %s271
    %s272 = sphi 0, %s269
    %s273 = sphi 0, %s272
    %s289 = sphi 0, %s273
    %s295 = sphi 0, %s297
    %s298 = sphi 0, %s295
    %s299 = sphi 0, %s298
    %s315 = sphi 0, %s299
    %s321 = sphi 0, %s323
    %s324 = sphi 0, %s321
    %s325 = sphi 0, %s324
    %s341 = sphi 0, %s325
    %s347 = sphi 0, %s349
    %s350 = sphi 0, %s347
    %s351 = sphi 0, %s350
    %s367 = sphi 0, %s351
    %s373 = sphi 0, %s375
    %s376 = sphi 0, %s373
    %s377 = sphi 0, %s376
    %s393 = sphi 0, %s377
    %s399 = sphi 0, %s401
    %s402 = sphi 0, %s399
    %s403 = sphi 0, %s402
    %s419 = sphi 0, %s403
    %s425 = sphi 0, %s427
    %s428 = sphi 0, %s425
    %s429 = sphi 0, %s428
    %s445 = sphi 0, %s429
    %s449 = sphi 0, %s449
    %s451 = sphi 0, %s449
    %s452 = sphi 0, %s451
    %s466 = sphi 0, %s452
    %s470 = sphi 0, %s470
    %s472 = sphi 0, %s470
    %s473 = sphi 0, %s472
    %s487 = sphi 0, %s473
    %s491 = sphi 0, %s491
    %s493 = sphi 0, %s491
    %s494 = sphi 0, %s493
    %s508 = sphi 0, %s494
    %s512 = sphi 0, %s512
    %s514 = sphi 0, %s512
    %s515 = sphi 0, %s514
    %s529 = sphi 0, %s515
    %s535 = sphi 0, %s537
    %s538 = sphi 0, %s535
    %s539 = sphi 0, %s538
    %s555 = sphi 0, %s539
  $region4: #{tpu_custom_call.1} parent=0 // loop_header_branch
    %31 = sbr.rel (%p29) target = $region8
  $region5: #{tpu_custom_call.1} parent=0 // loop_body
    %s33 = ssub.s32 %s28, 1
    %s34 = ssub.s32 %s28, 2
    %s41 = sadd.s32 1, %s36
    %p42 = scmp.ge.s32.totalorder %s41, 3
    %s43 = scalar_select %p42, 0, %s41
    %s44 = sadd.s32 1, %s35
    %s45 = scalar_select %p42, %s44, %s35
    %p46 = scmp.ge.s32.totalorder %s45, 2
    %s47 = scalar_select %p46, 0, %s45
    %s48 = ssub.s32 %s35, %s47
    %p49 = scmp.eq.s32.totalorder %s48, 0
    %s51 = sadd.s32 %s50, 1
    %s52 = scalar_select %p49, %s50, %s51
    %p55 = pneg %p49
    %p56 = scmp.eq.s32.totalorder %s28, 5
    %p57 = por %p55, %p56
    %p58 = scmp.ne.s32.totalorder %s50, %s53
    %p59 = scmp.eq.s32.totalorder %s28, 0
    %p60 = por %p58, %p59
    %p61 = scmp.ne.s32.totalorder %s50, %s53
    %p62 = scmp.eq.s32.totalorder %s33, 5
    %p63 = por %p61, %p62
    %p64 = scmp.ne.s32.totalorder %s53, %s54
    %p65 = scmp.eq.s32.totalorder %s33, 0
    %p66 = por %p64, %p65
    %p67 = scmp.ne.s32.totalorder %s53, %s54
    %p68 = scmp.eq.s32.totalorder %s34, 5
    %p69 = por %p67, %p68
    %p71 = scmp.ne.s32.totalorder %s54, %s70
    %p72 = scmp.eq.s32.totalorder %s34, 0
    %p73 = por %p71, %p72
    %s74 = ssub.s32 %s35, %s47
    %p75 = scmp.eq.s32.totalorder %s74, 0
    %s77 = sadd.s32 %s76, 1
    %s78 = scalar_select %p75, %s76, %s77
    %p81 = pneg %p75
    %p82 = scmp.eq.s32.totalorder %s28, 5
    %p83 = por %p81, %p82
    %p84 = scmp.ne.s32.totalorder %s76, %s79
    %p85 = scmp.eq.s32.totalorder %s28, 0
    %p86 = por %p84, %p85
    %p87 = scmp.ne.s32.totalorder %s76, %s79
    %p88 = scmp.eq.s32.totalorder %s33, 5
    %p89 = por %p87, %p88
    %p90 = scmp.ne.s32.totalorder %s79, %s80
    %p91 = scmp.eq.s32.totalorder %s33, 0
    %p92 = por %p90, %p91
    %p93 = scmp.ne.s32.totalorder %s79, %s80
    %p94 = scmp.eq.s32.totalorder %s34, 5
    %p95 = por %p93, %p94
    %p97 = scmp.ne.s32.totalorder %s80, %s96
    %p98 = scmp.eq.s32.totalorder %s34, 0
    %p99 = por %p97, %p98
    %s100 = ssub.s32 %s35, %s47
    %p101 = scmp.eq.s32.totalorder %s100, 0
    %s103 = sadd.s32 %s102, 1
    %s104 = scalar_select %p101, %s102, %s103
    %p107 = pneg %p101
    %p108 = scmp.eq.s32.totalorder %s28, 5
    %p109 = por %p107, %p108
    %p110 = scmp.ne.s32.totalorder %s102, %s105
    %p111 = scmp.eq.s32.totalorder %s28, 0
    %p112 = por %p110, %p111
    %p113 = scmp.ne.s32.totalorder %s102, %s105
    %p114 = scmp.eq.s32.totalorder %s33, 5
    %p115 = por %p113, %p114
    %p116 = scmp.ne.s32.totalorder %s105, %s106
    %p117 = scmp.eq.s32.totalorder %s33, 0
    %p118 = por %p116, %p117
    %p119 = scmp.ne.s32.totalorder %s105, %s106
    %p120 = scmp.eq.s32.totalorder %s34, 5
    %p121 = por %p119, %p120
    %p123 = scmp.ne.s32.totalorder %s106, %s122
    %p124 = scmp.eq.s32.totalorder %s34, 0
    %p125 = por %p123, %p124
    %s126 = ssub.s32 %s35, %s47
    %p127 = scmp.eq.s32.totalorder %s126, 0
    %s129 = sadd.s32 %s128, 1
    %s130 = scalar_select %p127, %s128, %s129
    %p133 = pneg %p127
    %p134 = scmp.eq.s32.totalorder %s28, 5
    %p135 = por %p133, %p134
    %p136 = scmp.ne.s32.totalorder %s128, %s131
    %p137 = scmp.eq.s32.totalorder %s28, 0
    %p138 = por %p136, %p137
    %p139 = scmp.ne.s32.totalorder %s128, %s131
    %p140 = scmp.eq.s32.totalorder %s33, 5
    %p141 = por %p139, %p140
    %p142 = scmp.ne.s32.totalorder %s131, %s132
    %p143 = scmp.eq.s32.totalorder %s33, 0
    %p144 = por %p142, %p143
    %p145 = scmp.ne.s32.totalorder %s131, %s132
    %p146 = scmp.eq.s32.totalorder %s34, 5
    %p147 = por %p145, %p146
    %p149 = scmp.ne.s32.totalorder %s132, %s148
    %p150 = scmp.eq.s32.totalorder %s34, 0
    %p151 = por %p149, %p150
    %s153 = sadd.s32 %s152, 1
    %p156 = scmp.eq.s32.totalorder %s28, 5
    %p157 = scmp.ne.s32.totalorder %s152, %s154
    %p158 = scmp.eq.s32.totalorder %s28, 0
    %p159 = por %p157, %p158
    %p160 = scmp.ne.s32.totalorder %s152, %s154
    %p161 = scmp.eq.s32.totalorder %s33, 5
    %p162 = por %p160, %p161
    %p163 = scmp.ne.s32.totalorder %s154, %s155
    %p164 = scmp.eq.s32.totalorder %s33, 0
    %p165 = por %p163, %p164
    %p166 = scmp.ne.s32.totalorder %s154, %s155
    %p167 = scmp.eq.s32.totalorder %s34, 5
    %p168 = por %p166, %p167
    %p170 = scmp.ne.s32.totalorder %s155, %s169
    %p171 = scmp.eq.s32.totalorder %s34, 0
    %p172 = por %p170, %p171
    %s174 = sadd.s32 %s173, 1
    %p177 = scmp.eq.s32.totalorder %s28, 5
    %p178 = scmp.ne.s32.totalorder %s173, %s175
    %p179 = scmp.eq.s32.totalorder %s28, 0
    %p180 = por %p178, %p179
    %p181 = scmp.ne.s32.totalorder %s173, %s175
    %p182 = scmp.eq.s32.totalorder %s33, 5
    %p183 = por %p181, %p182
    %p184 = scmp.ne.s32.totalorder %s175, %s176
    %p185 = scmp.eq.s32.totalorder %s33, 0
    %p186 = por %p184, %p185
    %p187 = scmp.ne.s32.totalorder %s175, %s176
    %p188 = scmp.eq.s32.totalorder %s34, 5
    %p189 = por %p187, %p188
    %p191 = scmp.ne.s32.totalorder %s176, %s190
    %p192 = scmp.eq.s32.totalorder %s34, 0
    %p193 = por %p191, %p192
    %s195 = sadd.s32 %s194, 1
    %p198 = scmp.eq.s32.totalorder %s28, 5
    %p199 = scmp.ne.s32.totalorder %s194, %s196
    %p200 = scmp.eq.s32.totalorder %s28, 0
    %p201 = por %p199, %p200
    %p202 = scmp.ne.s32.totalorder %s194, %s196
    %p203 = scmp.eq.s32.totalorder %s33, 5
    %p204 = por %p202, %p203
    %p205 = scmp.ne.s32.totalorder %s196, %s197
    %p206 = scmp.eq.s32.totalorder %s33, 0
    %p207 = por %p205, %p206
    %p208 = scmp.ne.s32.totalorder %s196, %s197
    %p209 = scmp.eq.s32.totalorder %s34, 5
    %p210 = por %p208, %p209
    %p212 = scmp.ne.s32.totalorder %s197, %s211
    %p213 = scmp.eq.s32.totalorder %s34, 0
    %p214 = por %p212, %p213
    %s215 = ssub.s32 %s36, %s43
    %p216 = scmp.eq.s32.totalorder %s215, 0
    %s218 = sadd.s32 %s217, 1
    %s219 = scalar_select %p216, %s217, %s218
    %p222 = pneg %p216
    %p223 = scmp.eq.s32.totalorder %s28, 5
    %p224 = por %p222, %p223
    %p225 = scmp.ne.s32.totalorder %s217, %s220
    %p226 = scmp.eq.s32.totalorder %s28, 0
    %p227 = por %p225, %p226
    %p228 = scmp.ne.s32.totalorder %s217, %s220
    %p229 = scmp.eq.s32.totalorder %s33, 5
    %p230 = por %p228, %p229
    %p231 = scmp.ne.s32.totalorder %s220, %s221
    %p232 = scmp.eq.s32.totalorder %s33, 0
    %p233 = por %p231, %p232
    %p234 = scmp.ne.s32.totalorder %s220, %s221
    %p235 = scmp.eq.s32.totalorder %s34, 5
    %p236 = por %p234, %p235
    %p238 = scmp.ne.s32.totalorder %s221, %s237
    %p239 = scmp.eq.s32.totalorder %s34, 0
    %p240 = por %p238, %p239
    %s241 = ssub.s32 %s36, %s43
    %p242 = scmp.eq.s32.totalorder %s241, 0
    %s244 = sadd.s32 %s243, 1
    %s245 = scalar_select %p242, %s243, %s244
    %p248 = pneg %p242
    %p249 = scmp.eq.s32.totalorder %s28, 5
    %p250 = por %p248, %p249
    %p251 = scmp.ne.s32.totalorder %s243, %s246
    %p252 = scmp.eq.s32.totalorder %s28, 0
    %p253 = por %p251, %p252
    %p254 = scmp.ne.s32.totalorder %s243, %s246
    %p255 = scmp.eq.s32.totalorder %s33, 5
    %p256 = por %p254, %p255
    %p257 = scmp.ne.s32.totalorder %s246, %s247
    %p258 = scmp.eq.s32.totalorder %s33, 0
    %p259 = por %p257, %p258
    %p260 = scmp.ne.s32.totalorder %s246, %s247
    %p261 = scmp.eq.s32.totalorder %s34, 5
    %p262 = por %p260, %p261
    %p264 = scmp.ne.s32.totalorder %s247, %s263
    %p265 = scmp.eq.s32.totalorder %s34, 0
    %p266 = por %p264, %p265
    %s267 = ssub.s32 %s36, %s43
    %p268 = scmp.eq.s32.totalorder %s267, 0
    %s270 = sadd.s32 %s269, 1
    %s271 = scalar_select %p268, %s269, %s270
    %p274 = pneg %p268
    %p275 = scmp.eq.s32.totalorder %s28, 5
    %p276 = por %p274, %p275
    %p277 = scmp.ne.s32.totalorder %s269, %s272
    %p278 = scmp.eq.s32.totalorder %s28, 0
    %p279 = por %p277, %p278
    %p280 = scmp.ne.s32.totalorder %s269, %s272
    %p281 = scmp.eq.s32.totalorder %s33, 5
    %p282 = por %p280, %p281
    %p283 = scmp.ne.s32.totalorder %s272, %s273
    %p284 = scmp.eq.s32.totalorder %s33, 0
    %p285 = por %p283, %p284
    %p286 = scmp.ne.s32.totalorder %s272, %s273
    %p287 = scmp.eq.s32.totalorder %s34, 5
    %p288 = por %p286, %p287
    %p290 = scmp.ne.s32.totalorder %s273, %s289
    %p291 = scmp.eq.s32.totalorder %s34, 0
    %p292 = por %p290, %p291
    %s293 = ssub.s32 %s36, %s43
    %p294 = scmp.eq.s32.totalorder %s293, 0
    %s296 = sadd.s32 %s295, 1
    %s297 = scalar_select %p294, %s295, %s296
    %p300 = pneg %p294
    %p301 = scmp.eq.s32.totalorder %s28, 5
    %p302 = por %p300, %p301
    %p303 = scmp.ne.s32.totalorder %s295, %s298
    %p304 = scmp.eq.s32.totalorder %s28, 0
    %p305 = por %p303, %p304
    %p306 = scmp.ne.s32.totalorder %s295, %s298
    %p307 = scmp.eq.s32.totalorder %s33, 5
    %p308 = por %p306, %p307
    %p309 = scmp.ne.s32.totalorder %s298, %s299
    %p310 = scmp.eq.s32.totalorder %s33, 0
    %p311 = por %p309, %p310
    %p312 = scmp.ne.s32.totalorder %s298, %s299
    %p313 = scmp.eq.s32.totalorder %s34, 5
    %p314 = por %p312, %p313
    %p316 = scmp.ne.s32.totalorder %s299, %s315
    %p317 = scmp.eq.s32.totalorder %s34, 0
    %p318 = por %p316, %p317
    %s319 = ssub.s32 %s36, %s43
    %p320 = scmp.eq.s32.totalorder %s319, 0
    %s322 = sadd.s32 %s321, 1
    %s323 = scalar_select %p320, %s321, %s322
    %p326 = pneg %p320
    %p327 = scmp.eq.s32.totalorder %s28, 5
    %p328 = por %p326, %p327
    %p329 = scmp.ne.s32.totalorder %s321, %s324
    %p330 = scmp.eq.s32.totalorder %s28, 0
    %p331 = por %p329, %p330
    %p332 = scmp.ne.s32.totalorder %s321, %s324
    %p333 = scmp.eq.s32.totalorder %s33, 5
    %p334 = por %p332, %p333
    %p335 = scmp.ne.s32.totalorder %s324, %s325
    %p336 = scmp.eq.s32.totalorder %s33, 0
    %p337 = por %p335, %p336
    %p338 = scmp.ne.s32.totalorder %s324, %s325
    %p339 = scmp.eq.s32.totalorder %s34, 5
    %p340 = por %p338, %p339
    %p342 = scmp.ne.s32.totalorder %s325, %s341
    %p343 = scmp.eq.s32.totalorder %s34, 0
    %p344 = por %p342, %p343
    %s345 = ssub.s32 %s36, %s43
    %p346 = scmp.eq.s32.totalorder %s345, 0
    %s348 = sadd.s32 %s347, 1
    %s349 = scalar_select %p346, %s347, %s348
    %p352 = pneg %p346
    %p353 = scmp.eq.s32.totalorder %s28, 5
    %p354 = por %p352, %p353
    %p355 = scmp.ne.s32.totalorder %s347, %s350
    %p356 = scmp.eq.s32.totalorder %s28, 0
    %p357 = por %p355, %p356
    %p358 = scmp.ne.s32.totalorder %s347, %s350
    %p359 = scmp.eq.s32.totalorder %s33, 5
    %p360 = por %p358, %p359
    %p361 = scmp.ne.s32.totalorder %s350, %s351
    %p362 = scmp.eq.s32.totalorder %s33, 0
    %p363 = por %p361, %p362
    %p364 = scmp.ne.s32.totalorder %s350, %s351
    %p365 = scmp.eq.s32.totalorder %s34, 5
    %p366 = por %p364, %p365
    %p368 = scmp.ne.s32.totalorder %s351, %s367
    %p369 = scmp.eq.s32.totalorder %s34, 0
    %p370 = por %p368, %p369
    %s371 = ssub.s32 %s36, %s43
    %p372 = scmp.eq.s32.totalorder %s371, 0
    %s374 = sadd.s32 %s373, 1
    %s375 = scalar_select %p372, %s373, %s374
    %p378 = pneg %p372
    %p379 = scmp.eq.s32.totalorder %s28, 5
    %p380 = por %p378, %p379
    %p381 = scmp.ne.s32.totalorder %s373, %s376
    %p382 = scmp.eq.s32.totalorder %s28, 0
    %p383 = por %p381, %p382
    %p384 = scmp.ne.s32.totalorder %s373, %s376
    %p385 = scmp.eq.s32.totalorder %s33, 5
    %p386 = por %p384, %p385
    %p387 = scmp.ne.s32.totalorder %s376, %s377
    %p388 = scmp.eq.s32.totalorder %s33, 0
    %p389 = por %p387, %p388
    %p390 = scmp.ne.s32.totalorder %s376, %s377
    %p391 = scmp.eq.s32.totalorder %s34, 5
    %p392 = por %p390, %p391
    %p394 = scmp.ne.s32.totalorder %s377, %s393
    %p395 = scmp.eq.s32.totalorder %s34, 0
    %p396 = por %p394, %p395
    %s397 = ssub.s32 %s36, %s43
    %p398 = scmp.eq.s32.totalorder %s397, 0
    %s400 = sadd.s32 %s399, 1
    %s401 = scalar_select %p398, %s399, %s400
    %p404 = pneg %p398
    %p405 = scmp.eq.s32.totalorder %s28, 5
    %p406 = por %p404, %p405
    %p407 = scmp.ne.s32.totalorder %s399, %s402
    %p408 = scmp.eq.s32.totalorder %s28, 0
    %p409 = por %p407, %p408
    %p410 = scmp.ne.s32.totalorder %s399, %s402
    %p411 = scmp.eq.s32.totalorder %s33, 5
    %p412 = por %p410, %p411
    %p413 = scmp.ne.s32.totalorder %s402, %s403
    %p414 = scmp.eq.s32.totalorder %s33, 0
    %p415 = por %p413, %p414
    %p416 = scmp.ne.s32.totalorder %s402, %s403
    %p417 = scmp.eq.s32.totalorder %s34, 5
    %p418 = por %p416, %p417
    %p420 = scmp.ne.s32.totalorder %s403, %s419
    %p421 = scmp.eq.s32.totalorder %s34, 0
    %p422 = por %p420, %p421
    %s423 = ssub.s32 %s36, %s43
    %p424 = scmp.eq.s32.totalorder %s423, 0
    %s426 = sadd.s32 %s425, 1
    %s427 = scalar_select %p424, %s425, %s426
    %p430 = pneg %p424
    %p431 = scmp.eq.s32.totalorder %s28, 5
    %p432 = por %p430, %p431
    %p433 = scmp.ne.s32.totalorder %s425, %s428
    %p434 = scmp.eq.s32.totalorder %s28, 0
    %p435 = por %p433, %p434
    %p436 = scmp.ne.s32.totalorder %s425, %s428
    %p437 = scmp.eq.s32.totalorder %s33, 5
    %p438 = por %p436, %p437
    %p439 = scmp.ne.s32.totalorder %s428, %s429
    %p440 = scmp.eq.s32.totalorder %s33, 0
    %p441 = por %p439, %p440
    %p442 = scmp.ne.s32.totalorder %s428, %s429
    %p443 = scmp.eq.s32.totalorder %s34, 5
    %p444 = por %p442, %p443
    %p446 = scmp.ne.s32.totalorder %s429, %s445
    %p447 = scmp.eq.s32.totalorder %s34, 0
    %p448 = por %p446, %p447
    %s450 = sadd.s32 %s449, 1
    %p453 = scmp.eq.s32.totalorder %s28, 5
    %p454 = scmp.ne.s32.totalorder %s449, %s451
    %p455 = scmp.eq.s32.totalorder %s28, 0
    %p456 = por %p454, %p455
    %p457 = scmp.ne.s32.totalorder %s449, %s451
    %p458 = scmp.eq.s32.totalorder %s33, 5
    %p459 = por %p457, %p458
    %p460 = scmp.ne.s32.totalorder %s451, %s452
    %p461 = scmp.eq.s32.totalorder %s33, 0
    %p462 = por %p460, %p461
    %p463 = scmp.ne.s32.totalorder %s451, %s452
    %p464 = scmp.eq.s32.totalorder %s34, 5
    %p465 = por %p463, %p464
    %p467 = scmp.ne.s32.totalorder %s452, %s466
    %p468 = scmp.eq.s32.totalorder %s34, 0
    %p469 = por %p467, %p468
    %s471 = sadd.s32 %s470, 1
    %p474 = scmp.eq.s32.totalorder %s28, 5
    %p475 = scmp.ne.s32.totalorder %s470, %s472
    %p476 = scmp.eq.s32.totalorder %s28, 0
    %p477 = por %p475, %p476
    %p478 = scmp.ne.s32.totalorder %s470, %s472
    %p479 = scmp.eq.s32.totalorder %s33, 5
    %p480 = por %p478, %p479
    %p481 = scmp.ne.s32.totalorder %s472, %s473
    %p482 = scmp.eq.s32.totalorder %s33, 0
    %p483 = por %p481, %p482
    %p484 = scmp.ne.s32.totalorder %s472, %s473
    %p485 = scmp.eq.s32.totalorder %s34, 5
    %p486 = por %p484, %p485
    %p488 = scmp.ne.s32.totalorder %s473, %s487
    %p489 = scmp.eq.s32.totalorder %s34, 0
    %p490 = por %p488, %p489
    %s492 = sadd.s32 %s491, 1
    %p495 = scmp.eq.s32.totalorder %s28, 5
    %p496 = scmp.ne.s32.totalorder %s491, %s493
    %p497 = scmp.eq.s32.totalorder %s28, 0
    %p498 = por %p496, %p497
    %p499 = scmp.ne.s32.totalorder %s491, %s493
    %p500 = scmp.eq.s32.totalorder %s33, 5
    %p501 = por %p499, %p500
    %p502 = scmp.ne.s32.totalorder %s493, %s494
    %p503 = scmp.eq.s32.totalorder %s33, 0
    %p504 = por %p502, %p503
    %p505 = scmp.ne.s32.totalorder %s493, %s494
    %p506 = scmp.eq.s32.totalorder %s34, 5
    %p507 = por %p505, %p506
    %p509 = scmp.ne.s32.totalorder %s494, %s508
    %p510 = scmp.eq.s32.totalorder %s34, 0
    %p511 = por %p509, %p510
    %s513 = sadd.s32 %s512, 1
    %p516 = scmp.eq.s32.totalorder %s28, 5
    %p517 = scmp.ne.s32.totalorder %s512, %s514
    %p518 = scmp.eq.s32.totalorder %s28, 0
    %p519 = por %p517, %p518
    %p520 = scmp.ne.s32.totalorder %s512, %s514
    %p521 = scmp.eq.s32.totalorder %s33, 5
    %p522 = por %p520, %p521
    %p523 = scmp.ne.s32.totalorder %s514, %s515
    %p524 = scmp.eq.s32.totalorder %s33, 0
    %p525 = por %p523, %p524
    %p526 = scmp.ne.s32.totalorder %s514, %s515
    %p527 = scmp.eq.s32.totalorder %s34, 5
    %p528 = por %p526, %p527
    %p530 = scmp.ne.s32.totalorder %s515, %s529
    %p531 = scmp.eq.s32.totalorder %s34, 0
    %p532 = por %p530, %p531
    %s533 = ssub.s32 %s35, %s47
    %p534 = scmp.eq.s32.totalorder %s533, 0
    %s536 = sadd.s32 %s535, 1
    %s537 = scalar_select %p534, %s535, %s536
    %p540 = pneg %p534
    %p541 = scmp.eq.s32.totalorder %s28, 5
    %p542 = por %p540, %p541
    %p543 = scmp.ne.s32.totalorder %s535, %s538
    %p544 = scmp.eq.s32.totalorder %s28, 0
    %p545 = por %p543, %p544
    %p546 = scmp.ne.s32.totalorder %s535, %s538
    %p547 = scmp.eq.s32.totalorder %s33, 5
    %p548 = por %p546, %p547
    %p549 = scmp.ne.s32.totalorder %s538, %s539
    %p550 = scmp.eq.s32.totalorder %s33, 0
    %p551 = por %p549, %p550
    %p552 = scmp.ne.s32.totalorder %s538, %s539
    %p553 = scmp.eq.s32.totalorder %s34, 5
    %p554 = por %p552, %p553
    %p556 = scmp.ne.s32.totalorder %s539, %s555
    %p557 = scmp.eq.s32.totalorder %s34, 0
    %p558 = por %p556, %p557
    %p559 = scmp.le.s32.totalorder 1, %s28
    %p560 = scmp.lt.s32.totalorder %s28, 7
    %p561 = pnand %p559, %p560
    %p562 = pneg %p561
    // Predicated region
    $region9: #{tpu_custom_call.1} parent=5 // pred_check
      _
    $region10: #{tpu_custom_call.1} parent=5 // pred_check_branch
      %564 = sbr.rel (%p561) target = $region12
    $region11: #{tpu_custom_call.1} parent=5 // pred_region
      %s565 = ssub.s32 %s28, 1
      // Predicated region
      $region13: #{tpu_custom_call.1} parent=11 // pred_check
        %p566 = pneg %p165
      $region14: #{tpu_custom_call.1} parent=11 // pred_check_branch
        %568 = sbr.rel (%p566) target = $region16
      $region15: #{tpu_custom_call.1} parent=11 // pred_region
        _
      $region16: #{tpu_custom_call.1} parent=11 // pred_fallthru
        _
      // Predicated region
      $region17: #{tpu_custom_call.1} parent=11 // pred_check
        %p569 = pneg %p186
      $region18: #{tpu_custom_call.1} parent=11 // pred_check_branch
        %571 = sbr.rel (%p569) target = $region20
      $region19: #{tpu_custom_call.1} parent=11 // pred_region
        _
      $region20: #{tpu_custom_call.1} parent=11 // pred_fallthru
        _
      // Predicated region
      $region21: #{tpu_custom_call.1} parent=11 // pred_check
        %p572 = pneg %p207
      $region22: #{tpu_custom_call.1} parent=11 // pred_check_branch
        %574 = sbr.rel (%p572) target = $region24
      $region23: #{tpu_custom_call.1} parent=11 // pred_region
        _
      $region24: #{tpu_custom_call.1} parent=11 // pred_fallthru
        _
      // Predicated region
      $region25: #{tpu_custom_call.1} parent=11 // pred_check
        %p575 = pneg %p462
      $region26: #{tpu_custom_call.1} parent=11 // pred_check_branch
        %577 = sbr.rel (%p575) target = $region28
      $region27: #{tpu_custom_call.1} parent=11 // pred_region
        _
      $region28: #{tpu_custom_call.1} parent=11 // pred_fallthru
        _
      // Predicated region
      $region29: #{tpu_custom_call.1} parent=11 // pred_check
        %p578 = pneg %p483
      $region30: #{tpu_custom_call.1} parent=11 // pred_check_branch
        %580 = sbr.rel (%p578) target = $region32
      $region31: #{tpu_custom_call.1} parent=11 // pred_region
        _
      $region32: #{tpu_custom_call.1} parent=11 // pred_fallthru
        _
      // Predicated region
      $region33: #{tpu_custom_call.1} parent=11 // pred_check
        %p581 = pneg %p504
      $region34: #{tpu_custom_call.1} parent=11 // pred_check_branch
        %583 = sbr.rel (%p581) target = $region36
      $region35: #{tpu_custom_call.1} parent=11 // pred_region
        _
      $region36: #{tpu_custom_call.1} parent=11 // pred_fallthru
        _
      // Predicated region
      $region37: #{tpu_custom_call.1} parent=11 // pred_check
        %p584 = pneg %p525
      $region38: #{tpu_custom_call.1} parent=11 // pred_check_branch
        %586 = sbr.rel (%p584) target = $region40
      $region39: #{tpu_custom_call.1} parent=11 // pred_region
        _
      $region40: #{tpu_custom_call.1} parent=11 // pred_fallthru
        _
    $region12: #{tpu_custom_call.1} parent=5 // pred_fallthru
      _
    %p587 = scmp.lt.s32.totalorder %s28, 6
    // Predicated region
    $region41: #{tpu_custom_call.1} parent=5 // pred_check
      %p588 = pneg %p587
    $region42: #{tpu_custom_call.1} parent=5 // pred_check_branch
      %590 = sbr.rel (%p588) target = $region44
    $region43: #{tpu_custom_call.1} parent=5 // pred_region
      // Predicated region
      $region45: #{tpu_custom_call.1} parent=43 // pred_check
        %p591 = pneg %p60
      $region46: #{tpu_custom_call.1} parent=43 // pred_check_branch
        %593 = sbr.rel (%p591) target = $region48
      $region47: #{tpu_custom_call.1} parent=43 // pred_region
        %p594 = scmp.lt.s32.totalorder %s35, 1
        %s595 = scalar_select %p594, %s35, 1
        %s596 = smul.addr %s595, 2
        %s597 = scalar_lea.vmem %s0, %s596
      $region48: #{tpu_custom_call.1} parent=43 // pred_fallthru
        _
      // Predicated region
      $region49: #{tpu_custom_call.1} parent=43 // pred_check
        %p598 = pneg %p86
      $region50: #{tpu_custom_call.1} parent=43 // pred_check_branch
        %600 = sbr.rel (%p598) target = $region52
      $region51: #{tpu_custom_call.1} parent=43 // pred_region
        %p601 = scmp.lt.s32.totalorder %s35, 1
        %s602 = scalar_select %p601, %s35, 1
        %s603 = smul.addr %s602, 2
        %s604 = scalar_lea.vmem %s1, %s603
      $region52: #{tpu_custom_call.1} parent=43 // pred_fallthru
        _
      // Predicated region
      $region53: #{tpu_custom_call.1} parent=43 // pred_check
        %p605 = pneg %p112
      $region54: #{tpu_custom_call.1} parent=43 // pred_check_branch
        %607 = sbr.rel (%p605) target = $region56
      $region55: #{tpu_custom_call.1} parent=43 // pred_region
        %p608 = scmp.lt.s32.totalorder %s35, 1
        %s609 = scalar_select %p608, %s35, 1
        %s610 = smul.addr %s609, 4
        %s611 = smul.addr %s610, 8
        %s612 = scalar_lea.vmem %s2, %s611
      $region56: #{tpu_custom_call.1} parent=43 // pred_fallthru
        _
      // Predicated region
      $region57: #{tpu_custom_call.1} parent=43 // pred_check
        %p613 = pneg %p138
      $region58: #{tpu_custom_call.1} parent=43 // pred_check_branch
        %615 = sbr.rel (%p613) target = $region60
      $region59: #{tpu_custom_call.1} parent=43 // pred_region
        %s616 = smul.u32 2, %s35
        %p617 = scmp.lt.s32.totalorder %s616, 3
        %s618 = scalar_select %p617, %s616, 3
        %s619 = smul.addr %s618, 8
        %s620 = scalar_lea.vmem %s3, %s619
        %s621 = smul.u32 2, %s35
      $region60: #{tpu_custom_call.1} parent=43 // pred_fallthru
        _
      // Predicated region
      $region61: #{tpu_custom_call.1} parent=43 // pred_check
        %p622 = pneg %p227
      $region62: #{tpu_custom_call.1} parent=43 // pred_check_branch
        %624 = sbr.rel (%p622) target = $region64
      $region63: #{tpu_custom_call.1} parent=43 // pred_region
        %p625 = scmp.lt.s32.totalorder %s36, 2
        %s626 = scalar_select %p625, %s36, 2
        %s627 = smul.addr %s626, 4
        %s628 = smul.addr %s627, 8
        %s629 = scalar_lea.vmem %s7, %s628
      $region64: #{tpu_custom_call.1} parent=43 // pred_fallthru
        _
      // Predicated region
      $region65: #{tpu_custom_call.1} parent=43 // pred_check
        %p630 = pneg %p253
      $region66: #{tpu_custom_call.1} parent=43 // pred_check_branch
        %632 = sbr.rel (%p630) target = $region68
      $region67: #{tpu_custom_call.1} parent=43 // pred_region
        %p633 = scmp.lt.s32.totalorder %s36, 2
        %s634 = scalar_select %p633, %s36, 2
        %s635 = smul.addr %s634, 4
        %s636 = smul.addr %s635, 8
        %s637 = scalar_lea.vmem %s8, %s636
      $region68: #{tpu_custom_call.1} parent=43 // pred_fallthru
        _
      // Predicated region
      $region69: #{tpu_custom_call.1} parent=43 // pred_check
        %p638 = pneg %p279
      $region70: #{tpu_custom_call.1} parent=43 // pred_check_branch
        %640 = sbr.rel (%p638) target = $region72
      $region71: #{tpu_custom_call.1} parent=43 // pred_region
        %p641 = scmp.lt.s32.totalorder %s36, 2
        %s642 = scalar_select %p641, %s36, 2
        %s643 = smul.addr %s642, 4
        %s644 = smul.addr %s643, 8
        %s645 = scalar_lea.vmem %s9, %s644
      $region72: #{tpu_custom_call.1} parent=43 // pred_fallthru
        _
      // Predicated region
      $region73: #{tpu_custom_call.1} parent=43 // pred_check
        %p646 = pneg %p305
      $region74: #{tpu_custom_call.1} parent=43 // pred_check_branch
        %648 = sbr.rel (%p646) target = $region76
      $region75: #{tpu_custom_call.1} parent=43 // pred_region
        %p649 = scmp.lt.s32.totalorder %s36, 2
        %s650 = scalar_select %p649, %s36, 2
        %s651 = smul.addr %s650, 4
        %s652 = smul.addr %s651, 8
        %s653 = scalar_lea.vmem %s10, %s652
      $region76: #{tpu_custom_call.1} parent=43 // pred_fallthru
        _
      // Predicated region
      $region77: #{tpu_custom_call.1} parent=43 // pred_check
        %p654 = pneg %p331
      $region78: #{tpu_custom_call.1} parent=43 // pred_check_branch
        %656 = sbr.rel (%p654) target = $region80
      $region79: #{tpu_custom_call.1} parent=43 // pred_region
        %p657 = scmp.lt.s32.totalorder %s36, 2
        %s658 = scalar_select %p657, %s36, 2
        %s659 = smul.addr %s658, 4
        %s660 = smul.addr %s659, 8
        %s661 = scalar_lea.vmem %s11, %s660
      $region80: #{tpu_custom_call.1} parent=43 // pred_fallthru
        _
      // Predicated region
      $region81: #{tpu_custom_call.1} parent=43 // pred_check
        %p662 = pneg %p357
      $region82: #{tpu_custom_call.1} parent=43 // pred_check_branch
        %664 = sbr.rel (%p662) target = $region84
      $region83: #{tpu_custom_call.1} parent=43 // pred_region
        %p665 = scmp.lt.s32.totalorder %s36, 2
        %s666 = scalar_select %p665, %s36, 2
        %s667 = smul.addr %s666, 4
        %s668 = smul.addr %s667, 8
        %s669 = scalar_lea.vmem %s12, %s668
      $region84: #{tpu_custom_call.1} parent=43 // pred_fallthru
        _
      // Predicated region
      $region85: #{tpu_custom_call.1} parent=43 // pred_check
        %p670 = pneg %p383
      $region86: #{tpu_custom_call.1} parent=43 // pred_check_branch
        %672 = sbr.rel (%p670) target = $region88
      $region87: #{tpu_custom_call.1} parent=43 // pred_region
        %p673 = scmp.lt.s32.totalorder %s36, 2
        %s674 = scalar_select %p673, %s36, 2
        %s675 = smul.addr %s674, 4
        %s676 = smul.addr %s675, 8
        %s677 = scalar_lea.vmem %s13, %s676
      $region88: #{tpu_custom_call.1} parent=43 // pred_fallthru
        _
      // Predicated region
      $region89: #{tpu_custom_call.1} parent=43 // pred_check
        %p678 = pneg %p409
      $region90: #{tpu_custom_call.1} parent=43 // pred_check_branch
        %680 = sbr.rel (%p678) target = $region92
      $region91: #{tpu_custom_call.1} parent=43 // pred_region
        %p681 = scmp.lt.s32.totalorder %s36, 2
        %s682 = scalar_select %p681, %s36, 2
        %s683 = smul.addr %s682, 4
        %s684 = smul.addr %s683, 8
        %s685 = scalar_lea.vmem %s14, %s684
      $region92: #{tpu_custom_call.1} parent=43 // pred_fallthru
        _
      // Predicated region
      $region93: #{tpu_custom_call.1} parent=43 // pred_check
        %p686 = pneg %p435
      $region94: #{tpu_custom_call.1} parent=43 // pred_check_branch
        %688 = sbr.rel (%p686) target = $region96
      $region95: #{tpu_custom_call.1} parent=43 // pred_region
        %p689 = scmp.lt.s32.totalorder %s36, 2
        %s690 = scalar_select %p689, %s36, 2
        %s691 = smul.addr %s690, 4
        %s692 = smul.addr %s691, 8
        %s693 = scalar_lea.vmem %s15, %s692
      $region96: #{tpu_custom_call.1} parent=43 // pred_fallthru
        _
    $region44: #{tpu_custom_call.1} parent=5 // pred_fallthru
      _
    %p694 = scmp.le.s32.totalorder 1, %s28
    %p695 = scmp.lt.s32.totalorder %s28, 7
    %p696 = pnand %p694, %p695
    %p697 = pneg %p696
    // Predicated region
    $region97: #{tpu_custom_call.1} parent=5 // pred_check
      _
    $region98: #{tpu_custom_call.1} parent=5 // pred_check_branch
      %699 = sbr.rel (%p696) target = $region100
    $region99: #{tpu_custom_call.1} parent=5 // pred_region
      %s700 = ssub.s32 %s28, 1
      %p701 = scmp.lt.s32.totalorder %s37, 1
      %s702 = scalar_select %p701, %s37, 1
      %s703 = smul.addr %s702, 2
      %s704 = scalar_lea.vmem %s0, %s703
      %p705 = pneg %p66
      %p706 = pneg %p63
      %p707 = scmp.lt.s32.totalorder %s37, 1
      %s708 = scalar_select %p707, %s37, 1
      %s709 = smul.addr %s708, 2
      %s710 = scalar_lea.vmem %s1, %s709
      %p711 = pneg %p92
      %p712 = pneg %p89
      %p713 = scmp.lt.s32.totalorder %s37, 1
      %s714 = scalar_select %p713, %s37, 1
      %s715 = smul.addr %s714, 4
      %s716 = smul.addr %s715, 8
      %s717 = scalar_lea.vmem %s2, %s716
      %p718 = pneg %p118
      %p719 = pneg %p115
      %s720 = smul.u32 2, %s37
      %p721 = scmp.lt.s32.totalorder %s720, 3
      %s722 = scalar_select %p721, %s720, 3
      %s723 = smul.addr %s722, 8
      %s724 = scalar_lea.vmem %s3, %s723
      %p725 = pneg %p144
      %p726 = pneg %p141
      %p727 = pneg %p165
      %p728 = pneg %p162
      %p729 = pneg %p186
      %p730 = pneg %p183
      %p731 = pneg %p207
      %p732 = pneg %p204
      %p733 = scmp.lt.s32.totalorder %s38, 2
      %s734 = scalar_select %p733, %s38, 2
      %s735 = smul.addr %s734, 4
      %s736 = smul.addr %s735, 8
      %s737 = scalar_lea.vmem %s7, %s736
      %p738 = pneg %p233
      %p739 = pneg %p230
      %p740 = scmp.lt.s32.totalorder %s38, 2
      %s741 = scalar_select %p740, %s38, 2
      %s742 = smul.addr %s741, 4
      %s743 = smul.addr %s742, 8
      %s744 = scalar_lea.vmem %s8, %s743
      %p745 = pneg %p259
      %p746 = pneg %p256
      %p747 = scmp.lt.s32.totalorder %s38, 2
      %s748 = scalar_select %p747, %s38, 2
      %s749 = smul.addr %s748, 4
      %s750 = smul.addr %s749, 8
      %s751 = scalar_lea.vmem %s9, %s750
      %p752 = pneg %p285
      %p753 = pneg %p282
      %p754 = scmp.lt.s32.totalorder %s38, 2
      %s755 = scalar_select %p754, %s38, 2
      %s756 = smul.addr %s755, 4
      %s757 = smul.addr %s756, 8
      %s758 = scalar_lea.vmem %s10, %s757
      %p759 = pneg %p311
      %p760 = pneg %p308
      %p761 = scmp.lt.s32.totalorder %s38, 2
      %s762 = scalar_select %p761, %s38, 2
      %s763 = smul.addr %s762, 4
      %s764 = smul.addr %s763, 8
      %s765 = scalar_lea.vmem %s11, %s764
      %p766 = pneg %p337
      %p767 = pneg %p334
      %p768 = scmp.lt.s32.totalorder %s38, 2
      %s769 = scalar_select %p768, %s38, 2
      %s770 = smul.addr %s769, 4
      %s771 = smul.addr %s770, 8
      %s772 = scalar_lea.vmem %s12, %s771
      %p773 = pneg %p363
      %p774 = pneg %p360
      %p775 = scmp.lt.s32.totalorder %s38, 2
      %s776 = scalar_select %p775, %s38, 2
      %s777 = smul.addr %s776, 4
      %s778 = smul.addr %s777, 8
      %s779 = scalar_lea.vmem %s13, %s778
      %p780 = pneg %p389
      %p781 = pneg %p386
      %p782 = scmp.lt.s32.totalorder %s38, 2
      %s783 = scalar_select %p782, %s38, 2
      %s784 = smul.addr %s783, 4
      %s785 = smul.addr %s784, 8
      %s786 = scalar_lea.vmem %s14, %s785
      %p787 = pneg %p415
      %p788 = pneg %p412
      %p789 = scmp.lt.s32.totalorder %s38, 2
      %s790 = scalar_select %p789, %s38, 2
      %s791 = smul.addr %s790, 4
      %s792 = smul.addr %s791, 8
      %s793 = scalar_lea.vmem %s15, %s792
      %p794 = pneg %p441
      %p795 = pneg %p438
      %p796 = pneg %p462
      %p797 = pneg %p459
      %p798 = pneg %p483
      %p799 = pneg %p480
      %p800 = pneg %p504
      %p801 = pneg %p501
      %p802 = pneg %p525
      %p803 = pneg %p522
      %p804 = pneg %p551
      %p805 = pneg %p548
      %p806 = scmp.lt.s32.totalorder %s37, 1
      %s807 = scalar_select %p806, %s37, 1
      %s808 = smul.addr %s807, 8
      %s809 = scalar_lea.vmem %s20, %s808
      %p810 = scmp.lt.s32.totalorder %s37, 1
      %s811 = scalar_select %p810, %s37, 1
      %s812 = smul.addr %s811, 2
      %s813 = scalar_lea.vmem %s0, %s812
      %p814 = scmp.lt.s32.totalorder %s37, 1
      %s815 = scalar_select %p814, %s37, 1
      %s816 = smul.addr %s815, 2
      %s817 = scalar_lea.vmem %s1, %s816
      %p818 = scmp.lt.s32.totalorder %s37, 1
      %s819 = scalar_select %p818, %s37, 1
      %s820 = smul.addr %s819, 4
      %s821 = smul.addr %s820, 8
      %s822 = scalar_lea.vmem %s2, %s821
      %s823 = smul.u32 2, %s37
      %p824 = scmp.lt.s32.totalorder %s823, 3
      %s825 = scalar_select %p824, %s823, 3
      %s826 = smul.addr %s825, 8
      %s827 = scalar_lea.vmem %s3, %s826
      %s828 = smul.u32 2, %s37
      %p829 = scmp.lt.s32.totalorder %s38, 2
      %s830 = scalar_select %p829, %s38, 2
      %s831 = smul.addr %s830, 4
      %s832 = smul.addr %s831, 8
      %s833 = scalar_lea.vmem %s7, %s832
      %p834 = scmp.lt.s32.totalorder %s38, 2
      %s835 = scalar_select %p834, %s38, 2
      %s836 = smul.addr %s835, 4
      %s837 = smul.addr %s836, 8
      %s838 = scalar_lea.vmem %s8, %s837
      %p839 = scmp.lt.s32.totalorder %s38, 2
      %s840 = scalar_select %p839, %s38, 2
      %s841 = smul.addr %s840, 4
      %s842 = smul.addr %s841, 8
      %s843 = scalar_lea.vmem %s9, %s842
      %p844 = scmp.lt.s32.totalorder %s38, 2
      %s845 = scalar_select %p844, %s38, 2
      %s846 = smul.addr %s845, 4
      %s847 = smul.addr %s846, 8
      %s848 = scalar_lea.vmem %s10, %s847
      %p849 = scmp.lt.s32.totalorder %s38, 2
      %s850 = scalar_select %p849, %s38, 2
      %s851 = smul.addr %s850, 4
      %s852 = smul.addr %s851, 8
      %s853 = scalar_lea.vmem %s11, %s852
      %p854 = scmp.lt.s32.totalorder %s38, 2
      %s855 = scalar_select %p854, %s38, 2
      %s856 = smul.addr %s855, 4
      %s857 = smul.addr %s856, 8
      %s858 = scalar_lea.vmem %s12, %s857
      %p859 = scmp.lt.s32.totalorder %s38, 2
      %s860 = scalar_select %p859, %s38, 2
      %s861 = smul.addr %s860, 4
      %s862 = smul.addr %s861, 8
      %s863 = scalar_lea.vmem %s13, %s862
      %p864 = scmp.lt.s32.totalorder %s38, 2
      %s865 = scalar_select %p864, %s38, 2
      %s866 = smul.addr %s865, 4
      %s867 = smul.addr %s866, 8
      %s868 = scalar_lea.vmem %s14, %s867
      %p869 = scmp.lt.s32.totalorder %s38, 2
      %s870 = scalar_select %p869, %s38, 2
      %s871 = smul.addr %s870, 4
      %s872 = smul.addr %s871, 8
      %s873 = scalar_lea.vmem %s15, %s872
      %p874 = scmp.lt.s32.totalorder %s37, 1
      %s875 = scalar_select %p874, %s37, 1
      %s876 = smul.addr %s875, 8
      %s877 = scalar_lea.vmem %s20, %s876
      %p878 = scmp.eq.s32.totalorder %s38, 0
      %v879 = vld [vmem:[%s822] sm:$0xff]
      %v880 = vld [vmem:[%s822 + $0x8] sm:$0xff]
      %v881 = vld [vmem:[%s822 + $0x10] sm:$0xff]
      %v882 = vld [vmem:[%s822 + $0x18] sm:$0xff]
      %v883 = vld [vmem:[#allocation2] sm:$0xff]
      %v884 = vld [vmem:[#allocation2 + $0x8] sm:$0xff]
      %v885 = vld [vmem:[#allocation2 + $0x10] sm:$0xff]
      %v886 = vld [vmem:[#allocation2 + $0x18] sm:$0xff]
      %s887 = scalar_select %p878, 1, 0
      %v888 = vstv %s887
      %vm889 = vcmp.eq.s32.totalorder %v888, 1
      %v890 = vsel %vm889, %v879, %v883
      %v891 = vsel %vm889, %v880, %v884
      %v892 = vsel %vm889, %v881, %v885
      %v893 = vsel %vm889, %v882, %v886
      %v894 = vld [vmem:[%s853] sm:$0xff]
      %v895 = vld [vmem:[%s853 + $0x8] sm:$0xff]
      %v896 = vld [vmem:[%s853 + $0x10] sm:$0xff]
      %v897 = vld [vmem:[%s853 + $0x18] sm:$0xff]
      %vm898 = vcmask 261120
      %v900 = vsel %vm898, %v894, 0
      %v903 = vsel %vm898, %v895, 0
      %v906 = vsel %vm898, %v896, 0
      %v909 = vsel %vm898, %v897, 0
      %911 = vmatprep.subr.mxu0 0.0
      %912 = vmatpush1.msra.mxu0 %v890
      %913 = vmatprep.subr.mxu0 0.0
      %914 = vmatpush1.msra.mxu0 %v891
      %915 = vmatprep.subr.mxu0 0.0
      %916 = vmatpush1.msra.mxu0 %v892
      %917 = vmatprep.subr.mxu0 0.0
      %918 = vmatpush1.msra.mxu0 %v893
      %919 = vmatprep.subr.mxu0 0.0
      %920 = vmatpush1.msra.mxu0 0.0
      %921 = vmatprep.subr.mxu0 0.0
      %922 = vmatpush1.msra.mxu0 0.0
      %923 = vmatprep.subr.mxu0 0.0
      %924 = vmatpush1.msra.mxu0 0.0
      %925 = vmatprep.subr.mxu0 0.0
      %926 = vmatpush1.msra.mxu0 0.0
      %927 = vmatprep.subr.mxu0 0.0
      %928 = vmatpush1.msra.mxu0 0.0
      %929 = vmatprep.subr.mxu0 0.0
      %930 = vmatpush1.msra.mxu0 0.0
      %931 = vmatprep.subr.mxu0 0.0
      %932 = vmatpush1.msra.mxu0 0.0
      %933 = vmatprep.subr.mxu0 0.0
      %934 = vmatpush1.msra.mxu0 0.0
      %935 = vmatprep.subr.mxu0 0.0
      %936 = vmatpush1.msra.mxu0 0.0
      %937 = vmatprep.subr.mxu0 0.0
      %938 = vmatpush1.msra.mxu0 0.0
      %939 = vmatprep.subr.mxu0 0.0
      %940 = vmatpush1.msra.mxu0 0.0
      %941 = vmatprep.subr.mxu0 0.0
      %942 = vmatpush1.msra.mxu0 0.0
      %943 = vmatprep.subr.mxu0 0.0
      %944 = vmatpush1.msra.mxu0 0.0
      %945 = vmatprep.subr.mxu0 0.0
      %946 = vmatpush1.msra.mxu0 0.0
      %947 = vmatprep.subr.mxu0 0.0
      %948 = vmatpush1.msra.mxu0 0.0
      %949 = vmatprep.subr.mxu0 0.0
      %950 = vmatpush1.msra.mxu0 0.0
      %951 = vmatprep.subr.mxu0 0.0
      %952 = vmatpush1.msra.mxu0 0.0
      %953 = vmatprep.subr.mxu0 0.0
      %954 = vmatpush1.msra.mxu0 0.0
      %955 = vmatprep.subr.mxu0 0.0
      %956 = vmatpush1.msra.mxu0 0.0
      %957 = vmatprep.subr.mxu0 0.0
      %958 = vmatpush1.msra.mxu0 0.0
      %959 = vmatprep.subr.mxu0 0.0
      %960 = vmatpush1.msra.mxu0 0.0
      %961 = vmatprep.subr.mxu0 0.0
      %962 = vmatpush1.msra.mxu0 0.0
      %963 = vmatprep.subr.mxu0 0.0
      %964 = vmatpush1.msra.mxu0 0.0
      %965 = vmatprep.subr.mxu0 0.0
      %966 = vmatpush1.msra.mxu0 0.0
      %967 = vmatprep.subr.mxu0 0.0
      %968 = vmatpush1.msra.mxu0 0.0
      %969 = vmatprep.subr.mxu0 0.0
      %970 = vmatpush1.msra.mxu0 0.0
      %971 = vmatprep.subr.mxu0 0.0
      %972 = vmatpush1.msra.mxu0 0.0
      %973 = vmatprep.subr.mxu0 0.0
      %974 = vmatpush1.msra.mxu0 0.0
      %975 = vmatprep.mubr.f32.mxu0 0.0
      %976 = vmatmul.mubr.f32.gmra.mrb[0].mxu0 %v900
      %v977 = vpop.f32.mrb[0].mxu0
      %v978 = vadd.f32 0.0, %v977
      %v979 = vpop.f32.mrb[0].mxu0
      %980 = vmatprep.mubr.f32.mxu0 0.0
      %981 = vmatmul.mubr.f32.gmra.mrb[0].mxu0 %v903
      %v982 = vpop.f32.mrb[0].mxu0
      %v983 = vadd.f32 0.0, %v982
      %v984 = vpop.f32.mrb[0].mxu0
      %985 = vmatprep.mubr.f32.mxu0 0.0
      %986 = vmatmul.mubr.f32.gmra.mrb[0].mxu0 %v906
      %v987 = vpop.f32.mrb[0].mxu0
      %v988 = vadd.f32 0.0, %v987
      %v989 = vpop.f32.mrb[0].mxu0
      %990 = vmatprep.mubr.f32.mxu0 0.0
      %991 = vmatmul.mubr.f32.gmra.mrb[0].mxu0 %v909
      %v992 = vpop.f32.mrb[0].mxu0
      %v993 = vadd.f32 0.0, %v992
      %v994 = vpop.f32.mrb[0].mxu0
      %995 = vdwg.mxu0
      %v996 = vld [vmem:[%s5] sm:$0xff]
      %v997 = vld [vmem:[%s5 + $0x8] sm:$0xff]
      %v998 = vld [vmem:[%s5 + $0x10] sm:$0xff]
      %v999 = vld [vmem:[%s5 + $0x18] sm:$0xff]
      %vm1000 = vcmask 130048
      %v1002 = vsel %vm1000, %v978, 0
      %v1005 = vsel %vm1000, %v983, 0
      %v1008 = vsel %vm1000, %v988, 0
      %v1011 = vsel %vm1000, %v993, 0
      %1013 = vmatprep.subr.mxu0 %v997
      %1014 = vmatpush1.msra.mxu0 %v996
      %1015 = vmatprep.subr.mxu0 %v999
      %1016 = vmatpush1.msra.mxu0 %v998
      %1017 = vmatprep.subr.mxu0 0.0
      %1018 = vmatpush1.msra.mxu0 0.0
      %1019 = vmatprep.subr.mxu0 0.0
      %1020 = vmatpush1.msra.mxu0 0.0
      %1021 = vmatprep.subr.mxu0 0.0
      %1022 = vmatpush1.msra.mxu0 0.0
      %1023 = vmatprep.subr.mxu0 0.0
      %1024 = vmatpush1.msra.mxu0 0.0
      %1025 = vmatprep.subr.mxu0 0.0
      %1026 = vmatpush1.msra.mxu0 0.0
      %1027 = vmatprep.subr.mxu0 0.0
      %1028 = vmatpush1.msra.mxu0 0.0
      %1029 = vmatprep.subr.mxu0 0.0
      %1030 = vmatpush1.msra.mxu0 0.0
      %1031 = vmatprep.subr.mxu0 0.0
      %1032 = vmatpush1.msra.mxu0 0.0
      %1033 = vmatprep.subr.mxu0 0.0
      %1034 = vmatpush1.msra.mxu0 0.0
      %1035 = vmatprep.subr.mxu0 0.0
      %1036 = vmatpush1.msra.mxu0 0.0
      %1037 = vmatprep.subr.mxu0 0.0
      %1038 = vmatpush1.msra.mxu0 0.0
      %1039 = vmatprep.subr.mxu0 0.0
      %1040 = vmatpush1.msra.mxu0 0.0
      %1041 = vmatprep.subr.mxu0 0.0
      %1042 = vmatpush1.msra.mxu0 0.0
      %1043 = vmatprep.subr.mxu0 0.0
      %1044 = vmatpush1.msra.mxu0 0.0
      %1045 = vmatprep.subr.mxu0 0.0
      %1046 = vmatpush1.msra.mxu0 0.0
      %1047 = vmatprep.subr.mxu0 0.0
      %1048 = vmatpush1.msra.mxu0 0.0
      %1049 = vmatprep.subr.mxu0 0.0
      %1050 = vmatpush1.msra.mxu0 0.0
      %1051 = vmatprep.subr.mxu0 0.0
      %1052 = vmatpush1.msra.mxu0 0.0
      %1053 = vmatprep.subr.mxu0 0.0
      %1054 = vmatpush1.msra.mxu0 0.0
      %1055 = vmatprep.subr.mxu0 0.0
      %1056 = vmatpush1.msra.mxu0 0.0
      %1057 = vmatprep.subr.mxu0 0.0
      %1058 = vmatpush1.msra.mxu0 0.0
      %1059 = vmatprep.subr.mxu0 0.0
      %1060 = vmatpush1.msra.mxu0 0.0
      %1061 = vmatprep.subr.mxu0 0.0
      %1062 = vmatpush1.msra.mxu0 0.0
      %1063 = vmatprep.subr.mxu0 0.0
      %1064 = vmatpush1.msra.mxu0 0.0
      %1065 = vmatprep.subr.mxu0 0.0
      %1066 = vmatpush1.msra.mxu0 0.0
      %1067 = vmatprep.subr.mxu0 0.0
      %1068 = vmatpush1.msra.mxu0 0.0
      %1069 = vmatprep.subr.mxu0 0.0
      %1070 = vmatpush1.msra.mxu0 0.0
      %1071 = vmatprep.subr.mxu0 0.0
      %1072 = vmatpush1.msra.mxu0 0.0
      %1073 = vmatprep.subr.mxu0 0.0
      %1074 = vmatpush1.msra.mxu0 0.0
      %1075 = vmatprep.subr.mxu0 0.0
      %1076 = vmatpush1.msra.mxu0 0.0
      %1077 = vmatprep.mubr.f32.mxu0 0.0
      %1078 = vmatmul.mubr.f32.gmra.mrb[0].mxu0 %v1002
      %v1079 = vpop.f32.mrb[0].mxu0
      %v1080 = vadd.f32 0.0, %v1079
      %v1081 = vpop.f32.mrb[0].mxu0
      %v1082 = vadd.f32 0.0, %v1081
      %1083 = vmatprep.mubr.f32.mxu0 0.0
      %1084 = vmatmul.mubr.f32.gmra.mrb[0].mxu0 %v1005
      %v1085 = vpop.f32.mrb[0].mxu0
      %v1086 = vadd.f32 0.0, %v1085
      %v1087 = vpop.f32.mrb[0].mxu0
      %v1088 = vadd.f32 0.0, %v1087
      %1089 = vmatprep.mubr.f32.mxu0 0.0
      %1090 = vmatmul.mubr.f32.gmra.mrb[0].mxu0 %v1008
      %v1091 = vpop.f32.mrb[0].mxu0
      %v1092 = vadd.f32 0.0, %v1091
      %v1093 = vpop.f32.mrb[0].mxu0
      %v1094 = vadd.f32 0.0, %v1093
      %1095 = vmatprep.mubr.f32.mxu0 0.0
      %1096 = vmatmul.mubr.f32.gmra.mrb[0].mxu0 %v1011
      %v1097 = vpop.f32.mrb[0].mxu0
      %v1098 = vadd.f32 0.0, %v1097
      %v1099 = vpop.f32.mrb[0].mxu0
      %v1100 = vadd.f32 0.0, %v1099
      %1101 = vdwg.mxu0
      %v1102 = vld [vmem:[%s813] sm:$0x3]
      %v1103 = vld [vmem:[%s4] sm:$0xff]
      %v1104 = vld [vmem:[%s4 + $0x8] sm:$0xff]
      %v1106 = vlaneseq
      %v1107 = vshrl.u32 %v1106, 7
      %v1108 = vsub.s32 0, %v1107
      %v1109 = vrot.slane %v1102, %v1108
      %v1110 = vlaneseq
      %v1111 = vshrl.u32 %v1110, 7
      %v1112 = vsub.s32 1, %v1111
      %v1113 = vrot.slane %v1102, %v1112
      %1117 = vset.pattern.permute.xlu0 0
      %1118 = vperm.xlu0 %1117, %v1103
      %v1119 = vpop.permute.xlu0 %1118
      %1122 = vset.pattern.permute.xlu0 0
      %1123 = vperm.xlu0 %1122, %v1104
      %v1124 = vpop.permute.xlu0 %1123
      %v1126 = vsub.f32 %v1109, %v1119
      %v1127 = vsub.f32 %v1113, %v1119
      %v1128 = vsub.f32 %v1109, %v1124
      %v1129 = vsub.f32 %v1113, %v1124
      %v1130 = vmul.f32 %v1126, -1.125
      %v1131 = vmul.f32 %v1127, -1.125
      %v1132 = vmul.f32 %v1128, -1.125
      %v1133 = vmul.f32 %v1129, -1.125
      %v1134 = vmul.f32 %v1130, %v1126
      %v1135 = vmul.f32 %v1131, %v1127
      %v1136 = vmul.f32 %v1132, %v1128
      %v1137 = vmul.f32 %v1133, %v1129
      %v1138 = vmul.f32 %v1134, 1.442695
      %v1139 = vpow.pop %v1138
      %v1140 = vmul.f32 %v1135, 1.442695
      %v1141 = vpow.pop %v1140
      %v1142 = vmul.f32 %v1136, 1.442695
      %v1143 = vpow.pop %v1142
      %v1144 = vmul.f32 %v1137, 1.442695
      %v1145 = vpow.pop %v1144
      %v1146 = vld [vmem:[%s833] sm:$0xff]
      %v1147 = vld [vmem:[%s833 + $0x8] sm:$0xff]
      %v1148 = vld [vmem:[%s833 + $0x10] sm:$0xff]
      %v1149 = vld [vmem:[%s833 + $0x18] sm:$0xff]
      %v1150 = vld [vmem:[%s838] sm:$0xff]
      %v1151 = vld [vmem:[%s838 + $0x8] sm:$0xff]
      %v1152 = vld [vmem:[%s838 + $0x10] sm:$0xff]
      %v1153 = vld [vmem:[%s838 + $0x18] sm:$0xff]
      %1155 = vset.pattern.permute.xlu0 0
      %1156 = vperm.xlu0 %1155, %v1150
      %v1157 = vpop.permute.xlu0 %1156
      %1160 = vset.pattern.permute.xlu0 0
      %1161 = vperm.xlu0 %1160, %v1151
      %v1162 = vpop.permute.xlu0 %1161
      %1165 = vset.pattern.permute.xlu0 0
      %1166 = vperm.xlu0 %1165, %v1152
      %v1167 = vpop.permute.xlu0 %1166
      %1170 = vset.pattern.permute.xlu0 0
      %1171 = vperm.xlu0 %1170, %v1153
      %v1172 = vpop.permute.xlu0 %1171
      %v1175 = vsel %vm1000, %v1146, 0
      %v1178 = vsel %vm1000, %v1147, 0
      %v1181 = vsel %vm1000, %v1148, 0
      %v1184 = vsel %vm1000, %v1149, 0
      %1186 = vmatprep.subr.mxu0 %v1141
      %1187 = vmatpush1.msra.mxu0 %v1139
      %1188 = vmatprep.subr.mxu0 %v1145
      %1189 = vmatpush1.msra.mxu0 %v1143
      %1190 = vmatprep.subr.mxu0 0.0
      %1191 = vmatpush1.msra.mxu0 0.0
      %1192 = vmatprep.subr.mxu0 0.0
      %1193 = vmatpush1.msra.mxu0 0.0
      %1194 = vmatprep.subr.mxu0 0.0
      %1195 = vmatpush1.msra.mxu0 0.0
      %1196 = vmatprep.subr.mxu0 0.0
      %1197 = vmatpush1.msra.mxu0 0.0
      %1198 = vmatprep.subr.mxu0 0.0
      %1199 = vmatpush1.msra.mxu0 0.0
      %1200 = vmatprep.subr.mxu0 0.0
      %1201 = vmatpush1.msra.mxu0 0.0
      %1202 = vmatprep.subr.mxu0 0.0
      %1203 = vmatpush1.msra.mxu0 0.0
      %1204 = vmatprep.subr.mxu0 0.0
      %1205 = vmatpush1.msra.mxu0 0.0
      %1206 = vmatprep.subr.mxu0 0.0
      %1207 = vmatpush1.msra.mxu0 0.0
      %1208 = vmatprep.subr.mxu0 0.0
      %1209 = vmatpush1.msra.mxu0 0.0
      %1210 = vmatprep.subr.mxu0 0.0
      %1211 = vmatpush1.msra.mxu0 0.0
      %1212 = vmatprep.subr.mxu0 0.0
      %1213 = vmatpush1.msra.mxu0 0.0
      %1214 = vmatprep.subr.mxu0 0.0
      %1215 = vmatpush1.msra.mxu0 0.0
      %1216 = vmatprep.subr.mxu0 0.0
      %1217 = vmatpush1.msra.mxu0 0.0
      %1218 = vmatprep.subr.mxu0 0.0
      %1219 = vmatpush1.msra.mxu0 0.0
      %1220 = vmatprep.subr.mxu0 0.0
      %1221 = vmatpush1.msra.mxu0 0.0
      %1222 = vmatprep.subr.mxu0 0.0
      %1223 = vmatpush1.msra.mxu0 0.0
      %1224 = vmatprep.subr.mxu0 0.0
      %1225 = vmatpush1.msra.mxu0 0.0
      %1226 = vmatprep.subr.mxu0 0.0
      %1227 = vmatpush1.msra.mxu0 0.0
      %1228 = vmatprep.subr.mxu0 0.0
      %1229 = vmatpush1.msra.mxu0 0.0
      %1230 = vmatprep.subr.mxu0 0.0
      %1231 = vmatpush1.msra.mxu0 0.0
      %1232 = vmatprep.subr.mxu0 0.0
      %1233 = vmatpush1.msra.mxu0 0.0
      %1234 = vmatprep.subr.mxu0 0.0
      %1235 = vmatpush1.msra.mxu0 0.0
      %1236 = vmatprep.subr.mxu0 0.0
      %1237 = vmatpush1.msra.mxu0 0.0
      %1238 = vmatprep.subr.mxu0 0.0
      %1239 = vmatpush1.msra.mxu0 0.0
      %1240 = vmatprep.subr.mxu0 0.0
      %1241 = vmatpush1.msra.mxu0 0.0
      %1242 = vmatprep.subr.mxu0 0.0
      %1243 = vmatpush1.msra.mxu0 0.0
      %1244 = vmatprep.subr.mxu0 0.0
      %1245 = vmatpush1.msra.mxu0 0.0
      %1246 = vmatprep.subr.mxu0 0.0
      %1247 = vmatpush1.msra.mxu0 0.0
      %1248 = vmatprep.subr.mxu0 0.0
      %1249 = vmatpush1.msra.mxu0 0.0
      %1250 = vmatprep.mubr.f32.mxu0 0.0
      %1251 = vmatmul.mubr.f32.gmra.mrb[0].mxu0 %v1175
      %v1252 = vpop.f32.mrb[0].mxu0
      %v1253 = vadd.f32 %v1157, %v1252
      %v1254 = vpop.f32.mrb[0].mxu0
      %v1255 = vadd.f32 %v1157, %v1254
      %1256 = vmatprep.mubr.f32.mxu0 0.0
      %1257 = vmatmul.mubr.f32.gmra.mrb[0].mxu0 %v1178
      %v1258 = vpop.f32.mrb[0].mxu0
      %v1259 = vadd.f32 %v1162, %v1258
      %v1260 = vpop.f32.mrb[0].mxu0
      %v1261 = vadd.f32 %v1162, %v1260
      %1262 = vmatprep.mubr.f32.mxu0 0.0
      %1263 = vmatmul.mubr.f32.gmra.mrb[0].mxu0 %v1181
      %v1264 = vpop.f32.mrb[0].mxu0
      %v1265 = vadd.f32 %v1167, %v1264
      %v1266 = vpop.f32.mrb[0].mxu0
      %v1267 = vadd.f32 %v1167, %v1266
      %1268 = vmatprep.mubr.f32.mxu0 0.0
      %1269 = vmatmul.mubr.f32.gmra.mrb[0].mxu0 %v1184
      %v1270 = vpop.f32.mrb[0].mxu0
      %v1271 = vadd.f32 %v1172, %v1270
      %v1272 = vpop.f32.mrb[0].mxu0
      %v1273 = vadd.f32 %v1172, %v1272
      %1274 = vdwg.mxu0
      %v1275 = vmax.f32 %v1253, 0.0
      %v1276 = vmax.f32 %v1255, 0.0
      %v1277 = vmax.f32 %v1259, 0.0
      %v1278 = vmax.f32 %v1261, 0.0
      %v1279 = vmax.f32 %v1265, 0.0
      %v1280 = vmax.f32 %v1267, 0.0
      %v1281 = vmax.f32 %v1271, 0.0
      %v1282 = vmax.f32 %v1273, 0.0
      %v1283 = vand.u32 2147483647, %v1253
      %v1284 = vand.u32 2147483647, %v1255
      %v1285 = vand.u32 2147483647, %v1259
      %v1286 = vand.u32 2147483647, %v1261
      %v1287 = vand.u32 2147483647, %v1265
      %v1288 = vand.u32 2147483647, %v1267
      %v1289 = vand.u32 2147483647, %v1271
      %v1290 = vand.u32 2147483647, %v1273
      %v1291 = vsub.f32 0.0, %v1283
      %v1292 = vsub.f32 0.0, %v1284
      %v1293 = vsub.f32 0.0, %v1285
      %v1294 = vsub.f32 0.0, %v1286
      %v1295 = vsub.f32 0.0, %v1287
      %v1296 = vsub.f32 0.0, %v1288
      %v1297 = vsub.f32 0.0, %v1289
      %v1298 = vsub.f32 0.0, %v1290
      %v1299 = vmul.f32 %v1291, 1.442695
      %v1300 = vpow.pop %v1299
      %v1301 = vmul.f32 %v1292, 1.442695
      %v1302 = vpow.pop %v1301
      %v1303 = vmul.f32 %v1293, 1.442695
      %v1304 = vpow.pop %v1303
      %v1305 = vmul.f32 %v1294, 1.442695
      %v1306 = vpow.pop %v1305
      %v1307 = vmul.f32 %v1295, 1.442695
      %v1308 = vpow.pop %v1307
      %v1309 = vmul.f32 %v1296, 1.442695
      %v1310 = vpow.pop %v1309
      %v1311 = vmul.f32 %v1297, 1.442695
      %v1312 = vpow.pop %v1311
      %v1313 = vmul.f32 %v1298, 1.442695
      %v1314 = vpow.pop %v1313
      %v1315 = vadd.f32 %v1300, 1.0
      %v1316 = vlog2.pop %v1315
      %v1317 = vmul.f32 %v1316, 0.6931472
      %v1318 = vmul.f32 -0.5, %v1300
      %v1319 = vadd.f32 %v1318, 1.0
      %v1320 = vmul.f32 %v1319, %v1300
      %v1321 = vand.u32 2147483647, %v1300
      %vm1322 = vcmp.lt.f32.partialorder %v1321, 0.0004427343
      %v1323 = vsel %vm1322, %v1320, %v1317
      %v1324 = vadd.f32 %v1302, 1.0
      %v1325 = vlog2.pop %v1324
      %v1326 = vmul.f32 %v1325, 0.6931472
      %v1327 = vmul.f32 -0.5, %v1302
      %v1328 = vadd.f32 %v1327, 1.0
      %v1329 = vmul.f32 %v1328, %v1302
      %v1330 = vand.u32 2147483647, %v1302
      %vm1331 = vcmp.lt.f32.partialorder %v1330, 0.0004427343
      %v1332 = vsel %vm1331, %v1329, %v1326
      %v1333 = vadd.f32 %v1304, 1.0
      %v1334 = vlog2.pop %v1333
      %v1335 = vmul.f32 %v1334, 0.6931472
      %v1336 = vmul.f32 -0.5, %v1304
      %v1337 = vadd.f32 %v1336, 1.0
      %v1338 = vmul.f32 %v1337, %v1304
      %v1339 = vand.u32 2147483647, %v1304
      %vm1340 = vcmp.lt.f32.partialorder %v1339, 0.0004427343
      %v1341 = vsel %vm1340, %v1338, %v1335
      %v1342 = vadd.f32 %v1306, 1.0
      %v1343 = vlog2.pop %v1342
      %v1344 = vmul.f32 %v1343, 0.6931472
      %v1345 = vmul.f32 -0.5, %v1306
      %v1346 = vadd.f32 %v1345, 1.0
      %v1347 = vmul.f32 %v1346, %v1306
      %v1348 = vand.u32 2147483647, %v1306
      %vm1349 = vcmp.lt.f32.partialorder %v1348, 0.0004427343
      %v1350 = vsel %vm1349, %v1347, %v1344
      %v1351 = vadd.f32 %v1308, 1.0
      %v1352 = vlog2.pop %v1351
      %v1353 = vmul.f32 %v1352, 0.6931472
      %v1354 = vmul.f32 -0.5, %v1308
      %v1355 = vadd.f32 %v1354, 1.0
      %v1356 = vmul.f32 %v1355, %v1308
      %v1357 = vand.u32 2147483647, %v1308
      %vm1358 = vcmp.lt.f32.partialorder %v1357, 0.0004427343
      %v1359 = vsel %vm1358, %v1356, %v1353
      %v1360 = vadd.f32 %v1310, 1.0
      %v1361 = vlog2.pop %v1360
      %v1362 = vmul.f32 %v1361, 0.6931472
      %v1363 = vmul.f32 -0.5, %v1310
      %v1364 = vadd.f32 %v1363, 1.0
      %v1365 = vmul.f32 %v1364, %v1310
      %v1366 = vand.u32 2147483647, %v1310
      %vm1367 = vcmp.lt.f32.partialorder %v1366, 0.0004427343
      %v1368 = vsel %vm1367, %v1365, %v1362
      %v1369 = vadd.f32 %v1312, 1.0
      %v1370 = vlog2.pop %v1369
      %v1371 = vmul.f32 %v1370, 0.6931472
      %v1372 = vmul.f32 -0.5, %v1312
      %v1373 = vadd.f32 %v1372, 1.0
      %v1374 = vmul.f32 %v1373, %v1312
      %v1375 = vand.u32 2147483647, %v1312
      %vm1376 = vcmp.lt.f32.partialorder %v1375, 0.0004427343
      %v1377 = vsel %vm1376, %v1374, %v1371
      %v1378 = vadd.f32 %v1314, 1.0
      %v1379 = vlog2.pop %v1378
      %v1380 = vmul.f32 %v1379, 0.6931472
      %v1381 = vmul.f32 -0.5, %v1314
      %v1382 = vadd.f32 %v1381, 1.0
      %v1383 = vmul.f32 %v1382, %v1314
      %v1384 = vand.u32 2147483647, %v1314
      %vm1385 = vcmp.lt.f32.partialorder %v1384, 0.0004427343
      %v1386 = vsel %vm1385, %v1383, %v1380
      %v1387 = vadd.f32 %v1275, %v1323
      %v1388 = vadd.f32 %v1276, %v1332
      %v1389 = vadd.f32 %v1277, %v1341
      %v1390 = vadd.f32 %v1278, %v1350
      %v1391 = vadd.f32 %v1279, %v1359
      %v1392 = vadd.f32 %v1280, %v1368
      %v1393 = vadd.f32 %v1281, %v1377
      %v1394 = vadd.f32 %v1282, %v1386
      %v1395 = vld [vmem:[%s843] sm:$0xff]
      %v1396 = vld [vmem:[%s843 + $0x8] sm:$0xff]
      %v1397 = vld [vmem:[%s843 + $0x10] sm:$0xff]
      %v1398 = vld [vmem:[%s843 + $0x18] sm:$0xff]
      %v1399 = vld [vmem:[%s848] sm:$0xff]
      %v1400 = vld [vmem:[%s848 + $0x8] sm:$0xff]
      %v1401 = vld [vmem:[%s848 + $0x10] sm:$0xff]
      %v1402 = vld [vmem:[%s848 + $0x18] sm:$0xff]
      %1404 = vset.pattern.permute.xlu0 0
      %1405 = vperm.xlu0 %1404, %v1399
      %v1406 = vpop.permute.xlu0 %1405
      %1409 = vset.pattern.permute.xlu0 0
      %1410 = vperm.xlu0 %1409, %v1400
      %v1411 = vpop.permute.xlu0 %1410
      %1414 = vset.pattern.permute.xlu0 0
      %1415 = vperm.xlu0 %1414, %v1401
      %v1416 = vpop.permute.xlu0 %1415
      %1419 = vset.pattern.permute.xlu0 0
      %1420 = vperm.xlu0 %1419, %v1402
      %v1421 = vpop.permute.xlu0 %1420
      %v1424 = vsel %vm898, %v1395, 0
      %v1427 = vsel %vm898, %v1396, 0
      %v1430 = vsel %vm898, %v1397, 0
      %v1433 = vsel %vm898, %v1398, 0
      %1435 = vmatprep.subr.mxu0 %v1388
      %1436 = vmatpush1.msra.mxu0 %v1387
      %1437 = vmatprep.subr.mxu0 %v1390
      %1438 = vmatpush1.msra.mxu0 %v1389
      %1439 = vmatprep.subr.mxu0 %v1392
      %1440 = vmatpush1.msra.mxu0 %v1391
      %1441 = vmatprep.subr.mxu0 %v1394
      %1442 = vmatpush1.msra.mxu0 %v1393
      %1443 = vmatprep.subr.mxu0 0.0
      %1444 = vmatpush1.msra.mxu0 0.0
      %1445 = vmatprep.subr.mxu0 0.0
      %1446 = vmatpush1.msra.mxu0 0.0
      %1447 = vmatprep.subr.mxu0 0.0
      %1448 = vmatpush1.msra.mxu0 0.0
      %1449 = vmatprep.subr.mxu0 0.0
      %1450 = vmatpush1.msra.mxu0 0.0
      %1451 = vmatprep.subr.mxu0 0.0
      %1452 = vmatpush1.msra.mxu0 0.0
      %1453 = vmatprep.subr.mxu0 0.0
      %1454 = vmatpush1.msra.mxu0 0.0
      %1455 = vmatprep.subr.mxu0 0.0
      %1456 = vmatpush1.msra.mxu0 0.0
      %1457 = vmatprep.subr.mxu0 0.0
      %1458 = vmatpush1.msra.mxu0 0.0
      %1459 = vmatprep.subr.mxu0 0.0
      %1460 = vmatpush1.msra.mxu0 0.0
      %1461 = vmatprep.subr.mxu0 0.0
      %1462 = vmatpush1.msra.mxu0 0.0
      %1463 = vmatprep.subr.mxu0 0.0
      %1464 = vmatpush1.msra.mxu0 0.0
      %1465 = vmatprep.subr.mxu0 0.0
      %1466 = vmatpush1.msra.mxu0 0.0
      %1467 = vmatprep.subr.mxu0 0.0
      %1468 = vmatpush1.msra.mxu0 0.0
      %1469 = vmatprep.subr.mxu0 0.0
      %1470 = vmatpush1.msra.mxu0 0.0
      %1471 = vmatprep.subr.mxu0 0.0
      %1472 = vmatpush1.msra.mxu0 0.0
      %1473 = vmatprep.subr.mxu0 0.0
      %1474 = vmatpush1.msra.mxu0 0.0
      %1475 = vmatprep.subr.mxu0 0.0
      %1476 = vmatpush1.msra.mxu0 0.0
      %1477 = vmatprep.subr.mxu0 0.0
      %1478 = vmatpush1.msra.mxu0 0.0
      %1479 = vmatprep.subr.mxu0 0.0
      %1480 = vmatpush1.msra.mxu0 0.0
      %1481 = vmatprep.subr.mxu0 0.0
      %1482 = vmatpush1.msra.mxu0 0.0
      %1483 = vmatprep.subr.mxu0 0.0
      %1484 = vmatpush1.msra.mxu0 0.0
      %1485 = vmatprep.subr.mxu0 0.0
      %1486 = vmatpush1.msra.mxu0 0.0
      %1487 = vmatprep.subr.mxu0 0.0
      %1488 = vmatpush1.msra.mxu0 0.0
      %1489 = vmatprep.subr.mxu0 0.0
      %1490 = vmatpush1.msra.mxu0 0.0
      %1491 = vmatprep.subr.mxu0 0.0
      %1492 = vmatpush1.msra.mxu0 0.0
      %1493 = vmatprep.subr.mxu0 0.0
      %1494 = vmatpush1.msra.mxu0 0.0
      %1495 = vmatprep.subr.mxu0 0.0
      %1496 = vmatpush1.msra.mxu0 0.0
      %1497 = vmatprep.subr.mxu0 0.0
      %1498 = vmatpush1.msra.mxu0 0.0
      %1499 = vmatprep.mubr.f32.mxu0 0.0
      %1500 = vmatmul.mubr.f32.gmra.mrb[0].mxu0 %v1424
      %v1501 = vpop.f32.mrb[0].mxu0
      %v1502 = vadd.f32 %v1406, %v1501
      %v1503 = vpop.f32.mrb[0].mxu0
      %v1504 = vadd.f32 %v1406, %v1503
      %1505 = vmatprep.mubr.f32.mxu0 0.0
      %1506 = vmatmul.mubr.f32.gmra.mrb[0].mxu0 %v1427
      %v1507 = vpop.f32.mrb[0].mxu0
      %v1508 = vadd.f32 %v1411, %v1507
      %v1509 = vpop.f32.mrb[0].mxu0
      %v1510 = vadd.f32 %v1411, %v1509
      %1511 = vmatprep.mubr.f32.mxu0 0.0
      %1512 = vmatmul.mubr.f32.gmra.mrb[0].mxu0 %v1430
      %v1513 = vpop.f32.mrb[0].mxu0
      %v1514 = vadd.f32 %v1416, %v1513
      %v1515 = vpop.f32.mrb[0].mxu0
      %v1516 = vadd.f32 %v1416, %v1515
      %1517 = vmatprep.mubr.f32.mxu0 0.0
      %1518 = vmatmul.mubr.f32.gmra.mrb[0].mxu0 %v1433
      %v1519 = vpop.f32.mrb[0].mxu0
      %v1520 = vadd.f32 %v1421, %v1519
      %v1521 = vpop.f32.mrb[0].mxu0
      %v1522 = vadd.f32 %v1421, %v1521
      %1523 = vdwg.mxu0
      %v1524 = vmul.f32 %v1502, %v1080
      %v1525 = vmul.f32 %v1504, %v1082
      %v1526 = vmul.f32 %v1508, %v1086
      %v1527 = vmul.f32 %v1510, %v1088
      %v1528 = vmul.f32 %v1514, %v1092
      %v1529 = vmul.f32 %v1516, %v1094
      %v1530 = vmul.f32 %v1520, %v1098
      %v1531 = vmul.f32 %v1522, %v1100
      %v1532 = vld [vmem:[%s817] sm:$0x3]
      %v1534 = vlaneseq
      %v1535 = vshrl.u32 %v1534, 7
      %v1536 = vsub.s32 0, %v1535
      %v1537 = vrot.slane %v1532, %v1536
      %v1538 = vlaneseq
      %v1539 = vshrl.u32 %v1538, 7
      %v1540 = vsub.s32 1, %v1539
      %v1541 = vrot.slane %v1532, %v1540
      %v1544 = vmul.f32 %v1524, %v1537
      %v1545 = vmul.f32 %v1525, %v1541
      %v1546 = vmul.f32 %v1526, %v1537
      %v1547 = vmul.f32 %v1527, %v1541
      %v1548 = vmul.f32 %v1528, %v1537
      %v1549 = vmul.f32 %v1529, %v1541
      %v1550 = vmul.f32 %v1530, %v1537
      %v1551 = vmul.f32 %v1531, %v1541
      %v1552 = vld [vmem:[%s6] sm:$0xff]
      %v1553 = vld [vmem:[%s6 + $0x8] sm:$0xff]
      %v1554 = vld [vmem:[%s6 + $0x10] sm:$0xff]
      %v1555 = vld [vmem:[%s6 + $0x18] sm:$0xff]
      %v1556 = vld [vmem:[%s6 + $0x20] sm:$0xff]
      %v1557 = vld [vmem:[%s6 + $0x28] sm:$0xff]
      %v1558 = vld [vmem:[%s6 + $0x30] sm:$0xff]
      %v1559 = vld [vmem:[%s6 + $0x38] sm:$0xff]
      %v1560 = vld [vmem:[%s6 + $0x40] sm:$0xff]
      %v1561 = vld [vmem:[%s6 + $0x48] sm:$0xff]
      %v1562 = vld [vmem:[%s6 + $0x50] sm:$0xff]
      %v1563 = vld [vmem:[%s6 + $0x58] sm:$0xff]
      %v1564 = vld [vmem:[%s6 + $0x60] sm:$0xff]
      %v1565 = vld [vmem:[%s6 + $0x68] sm:$0xff]
      %v1566 = vld [vmem:[%s6 + $0x70] sm:$0xff]
      %v1567 = vld [vmem:[%s6 + $0x78] sm:$0xff]
      %v1568 = vld [vmem:[%s6 + $0x80] sm:$0xff]
      %v1569 = vld [vmem:[%s6 + $0x88] sm:$0xff]
      %v1570 = vld [vmem:[%s6 + $0x90] sm:$0xff]
      %v1571 = vld [vmem:[%s6 + $0x98] sm:$0xff]
      %v1572 = vld [vmem:[%s6 + $0xa0] sm:$0xff]
      %v1573 = vld [vmem:[%s6 + $0xa8] sm:$0xff]
      %v1574 = vld [vmem:[%s6 + $0xb0] sm:$0xff]
      %v1575 = vld [vmem:[%s6 + $0xb8] sm:$0xff]
      %v1576 = vld [vmem:[%s6 + $0xc0] sm:$0xff]
      %v1577 = vld [vmem:[%s6 + $0xc8] sm:$0xff]
      %v1578 = vld [vmem:[%s6 + $0xd0] sm:$0xff]
      %v1579 = vld [vmem:[%s6 + $0xd8] sm:$0xff]
      %v1580 = vld [vmem:[%s6 + $0xe0] sm:$0xff]
      %v1581 = vld [vmem:[%s6 + $0xe8] sm:$0xff]
      %v1582 = vld [vmem:[%s6 + $0xf0] sm:$0xff]
      %v1583 = vld [vmem:[%s6 + $0xf8] sm:$0xff]
      %1584 = vmatprep.subr.mxu0 0.0
      %1585 = vmatpush1.msra.mxu0 %v1552
      %1586 = vmatprep.subr.mxu0 0.0
      %1587 = vmatpush1.msra.mxu0 %v1553
      %1588 = vmatprep.subr.mxu0 0.0
      %1589 = vmatpush1.msra.mxu0 %v1554
      %1590 = vmatprep.subr.mxu0 0.0
      %1591 = vmatpush1.msra.mxu0 %v1555
      %1592 = vmatprep.subr.mxu0 0.0
      %1593 = vmatpush1.msra.mxu0 %v1556
      %1594 = vmatprep.subr.mxu0 0.0
      %1595 = vmatpush1.msra.mxu0 %v1557
      %1596 = vmatprep.subr.mxu0 0.0
      %1597 = vmatpush1.msra.mxu0 %v1558
      %1598 = vmatprep.subr.mxu0 0.0
      %1599 = vmatpush1.msra.mxu0 %v1559
      %1600 = vmatprep.subr.mxu0 0.0
      %1601 = vmatpush1.msra.mxu0 %v1560
      %1602 = vmatprep.subr.mxu0 0.0
      %1603 = vmatpush1.msra.mxu0 %v1561
      %1604 = vmatprep.subr.mxu0 0.0
      %1605 = vmatpush1.msra.mxu0 %v1562
      %1606 = vmatprep.subr.mxu0 0.0
      %1607 = vmatpush1.msra.mxu0 %v1563
      %1608 = vmatprep.subr.mxu0 0.0
      %1609 = vmatpush1.msra.mxu0 %v1564
      %1610 = vmatprep.subr.mxu0 0.0
      %1611 = vmatpush1.msra.mxu0 %v1565
      %1612 = vmatprep.subr.mxu0 0.0
      %1613 = vmatpush1.msra.mxu0 %v1566
      %1614 = vmatprep.subr.mxu0 0.0
      %1615 = vmatpush1.msra.mxu0 %v1567
      %1616 = vmatprep.subr.mxu0 0.0
      %1617 = vmatpush1.msra.mxu0 %v1568
      %1618 = vmatprep.subr.mxu0 0.0
      %1619 = vmatpush1.msra.mxu0 %v1569
      %1620 = vmatprep.subr.mxu0 0.0
      %1621 = vmatpush1.msra.mxu0 %v1570
      %1622 = vmatprep.subr.mxu0 0.0
      %1623 = vmatpush1.msra.mxu0 %v1571
      %1624 = vmatprep.subr.mxu0 0.0
      %1625 = vmatpush1.msra.mxu0 %v1572
      %1626 = vmatprep.subr.mxu0 0.0
      %1627 = vmatpush1.msra.mxu0 %v1573
      %1628 = vmatprep.subr.mxu0 0.0
      %1629 = vmatpush1.msra.mxu0 %v1574
      %1630 = vmatprep.subr.mxu0 0.0
      %1631 = vmatpush1.msra.mxu0 %v1575
      %1632 = vmatprep.subr.mxu0 0.0
      %1633 = vmatpush1.msra.mxu0 %v1576
      %1634 = vmatprep.subr.mxu0 0.0
      %1635 = vmatpush1.msra.mxu0 %v1577
      %1636 = vmatprep.subr.mxu0 0.0
      %1637 = vmatpush1.msra.mxu0 %v1578
      %1638 = vmatprep.subr.mxu0 0.0
      %1639 = vmatpush1.msra.mxu0 %v1579
      %1640 = vmatprep.subr.mxu0 0.0
      %1641 = vmatpush1.msra.mxu0 %v1580
      %1642 = vmatprep.subr.mxu0 0.0
      %1643 = vmatpush1.msra.mxu0 %v1581
      %1644 = vmatprep.subr.mxu0 0.0
      %1645 = vmatpush1.msra.mxu0 %v1582
      %1646 = vmatprep.subr.mxu0 0.0
      %1647 = vmatpush1.msra.mxu0 %v1583
      %1648 = vmatprep.mubr.f32.mxu0 %v1545
      %1649 = vmatmul.mubr.f32.gmra.mrb[0].mxu0 %v1544
      %v1650 = vpop.f32.mrb[0].mxu0
      %v1651 = vadd.f32 0.0, %v1650
      %v1652 = vpop.f32.mrb[0].mxu0
      %1653 = vmatprep.mubr.f32.mxu0 %v1547
      %1654 = vmatmul.mubr.f32.gmra.mrb[0].mxu0 %v1546
      %v1655 = vpop.f32.mrb[0].mxu0
      %v1656 = vadd.f32 0.0, %v1655
      %v1657 = vpop.f32.mrb[0].mxu0
      %1658 = vmatprep.mubr.f32.mxu0 %v1549
      %1659 = vmatmul.mubr.f32.gmra.mrb[0].mxu0 %v1548
      %v1660 = vpop.f32.mrb[0].mxu0
      %v1661 = vadd.f32 0.0, %v1660
      %v1662 = vpop.f32.mrb[0].mxu0
      %1663 = vmatprep.mubr.f32.mxu0 %v1551
      %1664 = vmatmul.mubr.f32.gmra.mrb[0].mxu0 %v1550
      %v1665 = vpop.f32.mrb[0].mxu0
      %v1666 = vadd.f32 0.0, %v1665
      %v1667 = vpop.f32.mrb[0].mxu0
      %1668 = vdwg.mxu0
      %v1669 = vld [vmem:[%s858] sm:$0xff]
      %v1670 = vld [vmem:[%s858 + $0x8] sm:$0xff]
      %v1671 = vld [vmem:[%s858 + $0x10] sm:$0xff]
      %v1672 = vld [vmem:[%s858 + $0x18] sm:$0xff]
      %v1673 = vld [vmem:[%s863] sm:$0xff]
      %v1674 = vld [vmem:[%s863 + $0x8] sm:$0xff]
      %v1675 = vld [vmem:[%s863 + $0x10] sm:$0xff]
      %v1676 = vld [vmem:[%s863 + $0x18] sm:$0xff]
      %1678 = vset.pattern.permute.xlu0 0
      %1679 = vperm.xlu0 %1678, %v1673
      %v1680 = vpop.permute.xlu0 %1679
      %1683 = vset.pattern.permute.xlu0 0
      %1684 = vperm.xlu0 %1683, %v1674
      %v1685 = vpop.permute.xlu0 %1684
      %1688 = vset.pattern.permute.xlu0 0
      %1689 = vperm.xlu0 %1688, %v1675
      %v1690 = vpop.permute.xlu0 %1689
      %1693 = vset.pattern.permute.xlu0 0
      %1694 = vperm.xlu0 %1693, %v1676
      %v1695 = vpop.permute.xlu0 %1694
      %v1698 = vsel %vm898, %v1669, 0
      %v1701 = vsel %vm898, %v1670, 0
      %v1704 = vsel %vm898, %v1671, 0
      %v1707 = vsel %vm898, %v1672, 0
      %1709 = vmatprep.subr.mxu0 0.0
      %1710 = vmatpush1.msra.mxu0 %v1651
      %1711 = vmatprep.subr.mxu0 0.0
      %1712 = vmatpush1.msra.mxu0 %v1656
      %1713 = vmatprep.subr.mxu0 0.0
      %1714 = vmatpush1.msra.mxu0 %v1661
      %1715 = vmatprep.subr.mxu0 0.0
      %1716 = vmatpush1.msra.mxu0 %v1666
      %1717 = vmatprep.subr.mxu0 0.0
      %1718 = vmatpush1.msra.mxu0 0.0
      %1719 = vmatprep.subr.mxu0 0.0
      %1720 = vmatpush1.msra.mxu0 0.0
      %1721 = vmatprep.subr.mxu0 0.0
      %1722 = vmatpush1.msra.mxu0 0.0
      %1723 = vmatprep.subr.mxu0 0.0
      %1724 = vmatpush1.msra.mxu0 0.0
      %1725 = vmatprep.subr.mxu0 0.0
      %1726 = vmatpush1.msra.mxu0 0.0
      %1727 = vmatprep.subr.mxu0 0.0
      %1728 = vmatpush1.msra.mxu0 0.0
      %1729 = vmatprep.subr.mxu0 0.0
      %1730 = vmatpush1.msra.mxu0 0.0
      %1731 = vmatprep.subr.mxu0 0.0
      %1732 = vmatpush1.msra.mxu0 0.0
      %1733 = vmatprep.subr.mxu0 0.0
      %1734 = vmatpush1.msra.mxu0 0.0
      %1735 = vmatprep.subr.mxu0 0.0
      %1736 = vmatpush1.msra.mxu0 0.0
      %1737 = vmatprep.subr.mxu0 0.0
      %1738 = vmatpush1.msra.mxu0 0.0
      %1739 = vmatprep.subr.mxu0 0.0
      %1740 = vmatpush1.msra.mxu0 0.0
      %1741 = vmatprep.subr.mxu0 0.0
      %1742 = vmatpush1.msra.mxu0 0.0
      %1743 = vmatprep.subr.mxu0 0.0
      %1744 = vmatpush1.msra.mxu0 0.0
      %1745 = vmatprep.subr.mxu0 0.0
      %1746 = vmatpush1.msra.mxu0 0.0
      %1747 = vmatprep.subr.mxu0 0.0
      %1748 = vmatpush1.msra.mxu0 0.0
      %1749 = vmatprep.subr.mxu0 0.0
      %1750 = vmatpush1.msra.mxu0 0.0
      %1751 = vmatprep.subr.mxu0 0.0
      %1752 = vmatpush1.msra.mxu0 0.0
      %1753 = vmatprep.subr.mxu0 0.0
      %1754 = vmatpush1.msra.mxu0 0.0
      %1755 = vmatprep.subr.mxu0 0.0
      %1756 = vmatpush1.msra.mxu0 0.0
      %1757 = vmatprep.subr.mxu0 0.0
      %1758 = vmatpush1.msra.mxu0 0.0
      %1759 = vmatprep.subr.mxu0 0.0
      %1760 = vmatpush1.msra.mxu0 0.0
      %1761 = vmatprep.subr.mxu0 0.0
      %1762 = vmatpush1.msra.mxu0 0.0
      %1763 = vmatprep.subr.mxu0 0.0
      %1764 = vmatpush1.msra.mxu0 0.0
      %1765 = vmatprep.subr.mxu0 0.0
      %1766 = vmatpush1.msra.mxu0 0.0
      %1767 = vmatprep.subr.mxu0 0.0
      %1768 = vmatpush1.msra.mxu0 0.0
      %1769 = vmatprep.subr.mxu0 0.0
      %1770 = vmatpush1.msra.mxu0 0.0
      %1771 = vmatprep.subr.mxu0 0.0
      %1772 = vmatpush1.msra.mxu0 0.0
      %1773 = vmatprep.mubr.f32.mxu0 0.0
      %1774 = vmatmul.mubr.f32.gmra.mrb[0].mxu0 %v1698
      %v1775 = vpop.f32.mrb[0].mxu0
      %v1776 = vadd.f32 %v1680, %v1775
      %v1777 = vpop.f32.mrb[0].mxu0
      %1778 = vmatprep.mubr.f32.mxu0 0.0
      %1779 = vmatmul.mubr.f32.gmra.mrb[0].mxu0 %v1701
      %v1780 = vpop.f32.mrb[0].mxu0
      %v1781 = vadd.f32 %v1685, %v1780
      %v1782 = vpop.f32.mrb[0].mxu0
      %1783 = vmatprep.mubr.f32.mxu0 0.0
      %1784 = vmatmul.mubr.f32.gmra.mrb[0].mxu0 %v1704
      %v1785 = vpop.f32.mrb[0].mxu0
      %v1786 = vadd.f32 %v1690, %v1785
      %v1787 = vpop.f32.mrb[0].mxu0
      %1788 = vmatprep.mubr.f32.mxu0 0.0
      %1789 = vmatmul.mubr.f32.gmra.mrb[0].mxu0 %v1707
      %v1790 = vpop.f32.mrb[0].mxu0
      %v1791 = vadd.f32 %v1695, %v1790
      %v1792 = vpop.f32.mrb[0].mxu0
      %1793 = vdwg.mxu0
      %v1794 = vmax.f32 %v1776, 0.0
      %v1795 = vmax.f32 %v1781, 0.0
      %v1796 = vmax.f32 %v1786, 0.0
      %v1797 = vmax.f32 %v1791, 0.0
      %v1798 = vand.u32 2147483647, %v1776
      %v1799 = vand.u32 2147483647, %v1781
      %v1800 = vand.u32 2147483647, %v1786
      %v1801 = vand.u32 2147483647, %v1791
      %v1802 = vsub.f32 0.0, %v1798
      %v1803 = vsub.f32 0.0, %v1799
      %v1804 = vsub.f32 0.0, %v1800
      %v1805 = vsub.f32 0.0, %v1801
      %v1806 = vmul.f32 %v1802, 1.442695
      %v1807 = vpow.pop %v1806
      %v1808 = vmul.f32 %v1803, 1.442695
      %v1809 = vpow.pop %v1808
      %v1810 = vmul.f32 %v1804, 1.442695
      %v1811 = vpow.pop %v1810
      %v1812 = vmul.f32 %v1805, 1.442695
      %v1813 = vpow.pop %v1812
      %v1814 = vadd.f32 %v1807, 1.0
      %v1815 = vlog2.pop %v1814
      %v1816 = vmul.f32 %v1815, 0.6931472
      %v1817 = vmul.f32 -0.5, %v1807
      %v1818 = vadd.f32 %v1817, 1.0
      %v1819 = vmul.f32 %v1818, %v1807
      %v1820 = vand.u32 2147483647, %v1807
      %vm1821 = vcmp.lt.f32.partialorder %v1820, 0.0004427343
      %v1822 = vsel %vm1821, %v1819, %v1816
      %v1823 = vadd.f32 %v1809, 1.0
      %v1824 = vlog2.pop %v1823
      %v1825 = vmul.f32 %v1824, 0.6931472
      %v1826 = vmul.f32 -0.5, %v1809
      %v1827 = vadd.f32 %v1826, 1.0
      %v1828 = vmul.f32 %v1827, %v1809
      %v1829 = vand.u32 2147483647, %v1809
      %vm1830 = vcmp.lt.f32.partialorder %v1829, 0.0004427343
      %v1831 = vsel %vm1830, %v1828, %v1825
      %v1832 = vadd.f32 %v1811, 1.0
      %v1833 = vlog2.pop %v1832
      %v1834 = vmul.f32 %v1833, 0.6931472
      %v1835 = vmul.f32 -0.5, %v1811
      %v1836 = vadd.f32 %v1835, 1.0
      %v1837 = vmul.f32 %v1836, %v1811
      %v1838 = vand.u32 2147483647, %v1811
      %vm1839 = vcmp.lt.f32.partialorder %v1838, 0.0004427343
      %v1840 = vsel %vm1839, %v1837, %v1834
      %v1841 = vadd.f32 %v1813, 1.0
      %v1842 = vlog2.pop %v1841
      %v1843 = vmul.f32 %v1842, 0.6931472
      %v1844 = vmul.f32 -0.5, %v1813
      %v1845 = vadd.f32 %v1844, 1.0
      %v1846 = vmul.f32 %v1845, %v1813
      %v1847 = vand.u32 2147483647, %v1813
      %vm1848 = vcmp.lt.f32.partialorder %v1847, 0.0004427343
      %v1849 = vsel %vm1848, %v1846, %v1843
      %v1850 = vadd.f32 %v1794, %v1822
      %v1851 = vadd.f32 %v1795, %v1831
      %v1852 = vadd.f32 %v1796, %v1840
      %v1853 = vadd.f32 %v1797, %v1849
      %v1854 = vld [vmem:[%s868] sm:$0xff]
      %v1855 = vld [vmem:[%s868 + $0x8] sm:$0xff]
      %v1856 = vld [vmem:[%s868 + $0x10] sm:$0xff]
      %v1857 = vld [vmem:[%s868 + $0x18] sm:$0xff]
      %v1858 = vld [vmem:[%s873] sm:$0xff]
      %v1859 = vld [vmem:[%s873 + $0x8] sm:$0xff]
      %v1860 = vld [vmem:[%s873 + $0x10] sm:$0xff]
      %v1861 = vld [vmem:[%s873 + $0x18] sm:$0xff]
      %1863 = vset.pattern.permute.xlu0 0
      %1864 = vperm.xlu0 %1863, %v1858
      %v1865 = vpop.permute.xlu0 %1864
      %1868 = vset.pattern.permute.xlu0 0
      %1869 = vperm.xlu0 %1868, %v1859
      %v1870 = vpop.permute.xlu0 %1869
      %1873 = vset.pattern.permute.xlu0 0
      %1874 = vperm.xlu0 %1873, %v1860
      %v1875 = vpop.permute.xlu0 %1874
      %1878 = vset.pattern.permute.xlu0 0
      %1879 = vperm.xlu0 %1878, %v1861
      %v1880 = vpop.permute.xlu0 %1879
      %v1883 = vsel %vm898, %v1854, 0
      %v1886 = vsel %vm898, %v1855, 0
      %v1889 = vsel %vm898, %v1856, 0
      %v1892 = vsel %vm898, %v1857, 0
      %1894 = vmatprep.subr.mxu0 0.0
      %1895 = vmatpush1.msra.mxu0 %v1850
      %1896 = vmatprep.subr.mxu0 0.0
      %1897 = vmatpush1.msra.mxu0 %v1851
      %1898 = vmatprep.subr.mxu0 0.0
      %1899 = vmatpush1.msra.mxu0 %v1852
      %1900 = vmatprep.subr.mxu0 0.0
      %1901 = vmatpush1.msra.mxu0 %v1853
      %1902 = vmatprep.subr.mxu0 0.0
      %1903 = vmatpush1.msra.mxu0 0.0
      %1904 = vmatprep.subr.mxu0 0.0
      %1905 = vmatpush1.msra.mxu0 0.0
      %1906 = vmatprep.subr.mxu0 0.0
      %1907 = vmatpush1.msra.mxu0 0.0
      %1908 = vmatprep.subr.mxu0 0.0
      %1909 = vmatpush1.msra.mxu0 0.0
      %1910 = vmatprep.subr.mxu0 0.0
      %1911 = vmatpush1.msra.mxu0 0.0
      %1912 = vmatprep.subr.mxu0 0.0
      %1913 = vmatpush1.msra.mxu0 0.0
      %1914 = vmatprep.subr.mxu0 0.0
      %1915 = vmatpush1.msra.mxu0 0.0
      %1916 = vmatprep.subr.mxu0 0.0
      %1917 = vmatpush1.msra.mxu0 0.0
      %1918 = vmatprep.subr.mxu0 0.0
      %1919 = vmatpush1.msra.mxu0 0.0
      %1920 = vmatprep.subr.mxu0 0.0
      %1921 = vmatpush1.msra.mxu0 0.0
      %1922 = vmatprep.subr.mxu0 0.0
      %1923 = vmatpush1.msra.mxu0 0.0
      %1924 = vmatprep.subr.mxu0 0.0
      %1925 = vmatpush1.msra.mxu0 0.0
      %1926 = vmatprep.subr.mxu0 0.0
      %1927 = vmatpush1.msra.mxu0 0.0
      %1928 = vmatprep.subr.mxu0 0.0
      %1929 = vmatpush1.msra.mxu0 0.0
      %1930 = vmatprep.subr.mxu0 0.0
      %1931 = vmatpush1.msra.mxu0 0.0
      %1932 = vmatprep.subr.mxu0 0.0
      %1933 = vmatpush1.msra.mxu0 0.0
      %1934 = vmatprep.subr.mxu0 0.0
      %1935 = vmatpush1.msra.mxu0 0.0
      %1936 = vmatprep.subr.mxu0 0.0
      %1937 = vmatpush1.msra.mxu0 0.0
      %1938 = vmatprep.subr.mxu0 0.0
      %1939 = vmatpush1.msra.mxu0 0.0
      %1940 = vmatprep.subr.mxu0 0.0
      %1941 = vmatpush1.msra.mxu0 0.0
      %1942 = vmatprep.subr.mxu0 0.0
      %1943 = vmatpush1.msra.mxu0 0.0
      %1944 = vmatprep.subr.mxu0 0.0
      %1945 = vmatpush1.msra.mxu0 0.0
      %1946 = vmatprep.subr.mxu0 0.0
      %1947 = vmatpush1.msra.mxu0 0.0
      %1948 = vmatprep.subr.mxu0 0.0
      %1949 = vmatpush1.msra.mxu0 0.0
      %1950 = vmatprep.subr.mxu0 0.0
      %1951 = vmatpush1.msra.mxu0 0.0
      %1952 = vmatprep.subr.mxu0 0.0
      %1953 = vmatpush1.msra.mxu0 0.0
      %1954 = vmatprep.subr.mxu0 0.0
      %1955 = vmatpush1.msra.mxu0 0.0
      %1956 = vmatprep.subr.mxu0 0.0
      %1957 = vmatpush1.msra.mxu0 0.0
      %1958 = vmatprep.mubr.f32.mxu0 0.0
      %1959 = vmatmul.mubr.f32.gmra.mrb[0].mxu0 %v1883
      %v1960 = vpop.f32.mrb[0].mxu0
      %v1961 = vadd.f32 %v1865, %v1960
      %v1962 = vpop.f32.mrb[0].mxu0
      %1963 = vmatprep.mubr.f32.mxu0 0.0
      %1964 = vmatmul.mubr.f32.gmra.mrb[0].mxu0 %v1886
      %v1965 = vpop.f32.mrb[0].mxu0
      %v1966 = vadd.f32 %v1870, %v1965
      %v1967 = vpop.f32.mrb[0].mxu0
      %1968 = vmatprep.mubr.f32.mxu0 0.0
      %1969 = vmatmul.mubr.f32.gmra.mrb[0].mxu0 %v1889
      %v1970 = vpop.f32.mrb[0].mxu0
      %v1971 = vadd.f32 %v1875, %v1970
      %v1972 = vpop.f32.mrb[0].mxu0
      %1973 = vmatprep.mubr.f32.mxu0 0.0
      %1974 = vmatmul.mubr.f32.gmra.mrb[0].mxu0 %v1892
      %v1975 = vpop.f32.mrb[0].mxu0
      %v1976 = vadd.f32 %v1880, %v1975
      %v1977 = vpop.f32.mrb[0].mxu0
      %1978 = vdwg.mxu0
      %v1979 = vadd.f32 %v890, %v1961
      %v1980 = vadd.f32 %v891, %v1966
      %v1981 = vadd.f32 %v892, %v1971
      %v1982 = vadd.f32 %v893, %v1976
      %1983 = vst.msk [vmem:[#allocation2] sm:$0xff] %vm1000, %v1979
      %1984 = vst.msk [vmem:[#allocation2 + $0x8] sm:$0xff] %vm1000, %v1980
      %1985 = vst.msk [vmem:[#allocation2 + $0x10] sm:$0xff] %vm1000, %v1981
      %1986 = vst.msk [vmem:[#allocation2 + $0x18] sm:$0xff] %vm1000, %v1982
      %p1987 = scmp.eq.s32.totalorder %s38, 2
      // Predicated region
      $region101: #{tpu_custom_call.1} parent=99 // pred_check
        %p1988 = pneg %p1987
      $region102: #{tpu_custom_call.1} parent=99 // pred_check_branch
        %1990 = sbr.rel (%p1988) target = $region104
      $region103: #{tpu_custom_call.1} parent=99 // pred_region
        %v1991 = vld [vmem:[%s16] sm:$0xff]
        %v1992 = vld [vmem:[%s16 + $0x8] sm:$0xff]
        %v1993 = vld [vmem:[%s17] sm:$0xff]
        %v1994 = vld [vmem:[%s17 + $0x8] sm:$0xff]
        %1996 = vset.pattern.permute.xlu0 0
        %1997 = vperm.xlu0 %1996, %v1993
        %v1998 = vpop.permute.xlu0 %1997
        %2001 = vset.pattern.permute.xlu0 0
        %2002 = vperm.xlu0 %2001, %v1994
        %v2003 = vpop.permute.xlu0 %2002
        %v2006 = vsel %vm898, %v1991, 0
        %v2009 = vsel %vm898, %v1992, 0
        %2011 = vmatprep.subr.mxu0 0.0
        %2012 = vmatpush1.msra.mxu0 %v1979
        %2013 = vmatprep.subr.mxu0 0.0
        %2014 = vmatpush1.msra.mxu0 %v1980
        %2015 = vmatprep.subr.mxu0 0.0
        %2016 = vmatpush1.msra.mxu0 %v1981
        %2017 = vmatprep.subr.mxu0 0.0
        %2018 = vmatpush1.msra.mxu0 %v1982
        %2019 = vmatprep.subr.mxu0 0.0
        %2020 = vmatpush1.msra.mxu0 0.0
        %2021 = vmatprep.subr.mxu0 0.0
        %2022 = vmatpush1.msra.mxu0 0.0
        %2023 = vmatprep.subr.mxu0 0.0
        %2024 = vmatpush1.msra.mxu0 0.0
        %2025 = vmatprep.subr.mxu0 0.0
        %2026 = vmatpush1.msra.mxu0 0.0
        %2027 = vmatprep.subr.mxu0 0.0
        %2028 = vmatpush1.msra.mxu0 0.0
        %2029 = vmatprep.subr.mxu0 0.0
        %2030 = vmatpush1.msra.mxu0 0.0
        %2031 = vmatprep.subr.mxu0 0.0
        %2032 = vmatpush1.msra.mxu0 0.0
        %2033 = vmatprep.subr.mxu0 0.0
        %2034 = vmatpush1.msra.mxu0 0.0
        %2035 = vmatprep.subr.mxu0 0.0
        %2036 = vmatpush1.msra.mxu0 0.0
        %2037 = vmatprep.subr.mxu0 0.0
        %2038 = vmatpush1.msra.mxu0 0.0
        %2039 = vmatprep.subr.mxu0 0.0
        %2040 = vmatpush1.msra.mxu0 0.0
        %2041 = vmatprep.subr.mxu0 0.0
        %2042 = vmatpush1.msra.mxu0 0.0
        %2043 = vmatprep.subr.mxu0 0.0
        %2044 = vmatpush1.msra.mxu0 0.0
        %2045 = vmatprep.subr.mxu0 0.0
        %2046 = vmatpush1.msra.mxu0 0.0
        %2047 = vmatprep.subr.mxu0 0.0
        %2048 = vmatpush1.msra.mxu0 0.0
        %2049 = vmatprep.subr.mxu0 0.0
        %2050 = vmatpush1.msra.mxu0 0.0
        %2051 = vmatprep.subr.mxu0 0.0
        %2052 = vmatpush1.msra.mxu0 0.0
        %2053 = vmatprep.subr.mxu0 0.0
        %2054 = vmatpush1.msra.mxu0 0.0
        %2055 = vmatprep.subr.mxu0 0.0
        %2056 = vmatpush1.msra.mxu0 0.0
        %2057 = vmatprep.subr.mxu0 0.0
        %2058 = vmatpush1.msra.mxu0 0.0
        %2059 = vmatprep.subr.mxu0 0.0
        %2060 = vmatpush1.msra.mxu0 0.0
        %2061 = vmatprep.subr.mxu0 0.0
        %2062 = vmatpush1.msra.mxu0 0.0
        %2063 = vmatprep.subr.mxu0 0.0
        %2064 = vmatpush1.msra.mxu0 0.0
        %2065 = vmatprep.subr.mxu0 0.0
        %2066 = vmatpush1.msra.mxu0 0.0
        %2067 = vmatprep.subr.mxu0 0.0
        %2068 = vmatpush1.msra.mxu0 0.0
        %2069 = vmatprep.subr.mxu0 0.0
        %2070 = vmatpush1.msra.mxu0 0.0
        %2071 = vmatprep.subr.mxu0 0.0
        %2072 = vmatpush1.msra.mxu0 0.0
        %2073 = vmatprep.subr.mxu0 0.0
        %2074 = vmatpush1.msra.mxu0 0.0
        %2075 = vmatprep.mubr.f32.mxu0 0.0
        %2076 = vmatmul.mubr.f32.gmra.mrb[0].mxu0 %v2006
        %v2077 = vpop.f32.mrb[0].mxu0
        %v2078 = vadd.f32 %v1998, %v2077
        %v2079 = vpop.f32.mrb[0].mxu0
        %2080 = vmatprep.mubr.f32.mxu0 0.0
        %2081 = vmatmul.mubr.f32.gmra.mrb[0].mxu0 %v2009
        %v2082 = vpop.f32.mrb[0].mxu0
        %v2083 = vadd.f32 %v2003, %v2082
        %v2084 = vpop.f32.mrb[0].mxu0
        %2085 = vdwg.mxu0
        %v2086 = vmax.f32 %v2078, 0.0
        %v2087 = vmax.f32 %v2083, 0.0
        %v2088 = vand.u32 2147483647, %v2078
        %v2089 = vand.u32 2147483647, %v2083
        %v2090 = vsub.f32 0.0, %v2088
        %v2091 = vsub.f32 0.0, %v2089
        %v2092 = vmul.f32 %v2090, 1.442695
        %v2093 = vpow.pop %v2092
        %v2094 = vmul.f32 %v2091, 1.442695
        %v2095 = vpow.pop %v2094
        %v2096 = vadd.f32 %v2093, 1.0
        %v2097 = vlog2.pop %v2096
        %v2098 = vmul.f32 %v2097, 0.6931472
        %v2099 = vmul.f32 -0.5, %v2093
        %v2100 = vadd.f32 %v2099, 1.0
        %v2101 = vmul.f32 %v2100, %v2093
        %v2102 = vand.u32 2147483647, %v2093
        %vm2103 = vcmp.lt.f32.partialorder %v2102, 0.0004427343
        %v2104 = vsel %vm2103, %v2101, %v2098
        %v2105 = vadd.f32 %v2095, 1.0
        %v2106 = vlog2.pop %v2105
        %v2107 = vmul.f32 %v2106, 0.6931472
        %v2108 = vmul.f32 -0.5, %v2095
        %v2109 = vadd.f32 %v2108, 1.0
        %v2110 = vmul.f32 %v2109, %v2095
        %v2111 = vand.u32 2147483647, %v2095
        %vm2112 = vcmp.lt.f32.partialorder %v2111, 0.0004427343
        %v2113 = vsel %vm2112, %v2110, %v2107
        %v2114 = vadd.f32 %v2086, %v2104
        %v2115 = vadd.f32 %v2087, %v2113
        %v2116 = vld [vmem:[%s18] sm:$0x1]
        %v2117 = vld [vmem:[#allocation3] sm:$0x1]
        %2119 = vset.pattern.permute.xlu0 0
        %2120 = vperm.xlu0 %2119, %v2117
        %v2121 = vpop.permute.xlu0 %2120
        %v2123 = vlaneseq
        %v2124 = vshrl.u32 %v2123, 7
        %v2125 = vsub.s32 0, %v2124
        %v2126 = vrot.slane %v2121, %v2125
        %v2128 = vsel %vm1000, %v2116, 0
        %2130 = vmatprep.subr.mxu0 0.0
        %2131 = vmatpush1.msra.mxu0 %v2114
        %2132 = vmatprep.subr.mxu0 0.0
        %2133 = vmatpush1.msra.mxu0 %v2115
        %2134 = vmatprep.subr.mxu0 0.0
        %2135 = vmatpush1.msra.mxu0 0.0
        %2136 = vmatprep.subr.mxu0 0.0
        %2137 = vmatpush1.msra.mxu0 0.0
        %2138 = vmatprep.subr.mxu0 0.0
        %2139 = vmatpush1.msra.mxu0 0.0
        %2140 = vmatprep.subr.mxu0 0.0
        %2141 = vmatpush1.msra.mxu0 0.0
        %2142 = vmatprep.subr.mxu0 0.0
        %2143 = vmatpush1.msra.mxu0 0.0
        %2144 = vmatprep.subr.mxu0 0.0
        %2145 = vmatpush1.msra.mxu0 0.0
        %2146 = vmatprep.subr.mxu0 0.0
        %2147 = vmatpush1.msra.mxu0 0.0
        %2148 = vmatprep.subr.mxu0 0.0
        %2149 = vmatpush1.msra.mxu0 0.0
        %2150 = vmatprep.subr.mxu0 0.0
        %2151 = vmatpush1.msra.mxu0 0.0
        %2152 = vmatprep.subr.mxu0 0.0
        %2153 = vmatpush1.msra.mxu0 0.0
        %2154 = vmatprep.subr.mxu0 0.0
        %2155 = vmatpush1.msra.mxu0 0.0
        %2156 = vmatprep.subr.mxu0 0.0
        %2157 = vmatpush1.msra.mxu0 0.0
        %2158 = vmatprep.subr.mxu0 0.0
        %2159 = vmatpush1.msra.mxu0 0.0
        %2160 = vmatprep.subr.mxu0 0.0
        %2161 = vmatpush1.msra.mxu0 0.0
        %2162 = vmatprep.subr.mxu0 0.0
        %2163 = vmatpush1.msra.mxu0 0.0
        %2164 = vmatprep.subr.mxu0 0.0
        %2165 = vmatpush1.msra.mxu0 0.0
        %2166 = vmatprep.subr.mxu0 0.0
        %2167 = vmatpush1.msra.mxu0 0.0
        %2168 = vmatprep.subr.mxu0 0.0
        %2169 = vmatpush1.msra.mxu0 0.0
        %2170 = vmatprep.subr.mxu0 0.0
        %2171 = vmatpush1.msra.mxu0 0.0
        %2172 = vmatprep.subr.mxu0 0.0
        %2173 = vmatpush1.msra.mxu0 0.0
        %2174 = vmatprep.subr.mxu0 0.0
        %2175 = vmatpush1.msra.mxu0 0.0
        %2176 = vmatprep.subr.mxu0 0.0
        %2177 = vmatpush1.msra.mxu0 0.0
        %2178 = vmatprep.subr.mxu0 0.0
        %2179 = vmatpush1.msra.mxu0 0.0
        %2180 = vmatprep.subr.mxu0 0.0
        %2181 = vmatpush1.msra.mxu0 0.0
        %2182 = vmatprep.subr.mxu0 0.0
        %2183 = vmatpush1.msra.mxu0 0.0
        %2184 = vmatprep.subr.mxu0 0.0
        %2185 = vmatpush1.msra.mxu0 0.0
        %2186 = vmatprep.subr.mxu0 0.0
        %2187 = vmatpush1.msra.mxu0 0.0
        %2188 = vmatprep.subr.mxu0 0.0
        %2189 = vmatpush1.msra.mxu0 0.0
        %2190 = vmatprep.subr.mxu0 0.0
        %2191 = vmatpush1.msra.mxu0 0.0
        %2192 = vmatprep.subr.mxu0 0.0
        %2193 = vmatpush1.msra.mxu0 0.0
        %2194 = vmatprep.mubr.f32.mxu0 0.0
        %2195 = vmatmul.mubr.f32.gmra.mrb[0].mxu0 %v2128
        %v2196 = vpop.f32.mrb[0].mxu0
        %v2197 = vadd.f32 %v2126, %v2196
        %v2198 = vpop.f32.mrb[0].mxu0
        %2199 = vdwg.mxu0
        %v2200 = vld [vmem:[%s827] sm:$0xff]
        %v2201 = vld [vmem:[%s827 + $0x8] sm:$0xff]
        %v2203 = vsel %vm1000, %v2197, 0
        %2205 = vmatprep.subr.mxu0 0.0
        %2206 = vmatpush1.msra.mxu0 %v2200
        %2207 = vmatprep.subr.mxu0 0.0
        %2208 = vmatpush1.msra.mxu0 %v2201
        %2209 = vmatprep.subr.mxu0 0.0
        %2210 = vmatpush1.msra.mxu0 0.0
        %2211 = vmatprep.subr.mxu0 0.0
        %2212 = vmatpush1.msra.mxu0 0.0
        %2213 = vmatprep.subr.mxu0 0.0
        %2214 = vmatpush1.msra.mxu0 0.0
        %2215 = vmatprep.subr.mxu0 0.0
        %2216 = vmatpush1.msra.mxu0 0.0
        %2217 = vmatprep.subr.mxu0 0.0
        %2218 = vmatpush1.msra.mxu0 0.0
        %2219 = vmatprep.subr.mxu0 0.0
        %2220 = vmatpush1.msra.mxu0 0.0
        %2221 = vmatprep.subr.mxu0 0.0
        %2222 = vmatpush1.msra.mxu0 0.0
        %2223 = vmatprep.subr.mxu0 0.0
        %2224 = vmatpush1.msra.mxu0 0.0
        %2225 = vmatprep.subr.mxu0 0.0
        %2226 = vmatpush1.msra.mxu0 0.0
        %2227 = vmatprep.subr.mxu0 0.0
        %2228 = vmatpush1.msra.mxu0 0.0
        %2229 = vmatprep.subr.mxu0 0.0
        %2230 = vmatpush1.msra.mxu0 0.0
        %2231 = vmatprep.subr.mxu0 0.0
        %2232 = vmatpush1.msra.mxu0 0.0
        %2233 = vmatprep.subr.mxu0 0.0
        %2234 = vmatpush1.msra.mxu0 0.0
        %2235 = vmatprep.subr.mxu0 0.0
        %2236 = vmatpush1.msra.mxu0 0.0
        %2237 = vmatprep.subr.mxu0 0.0
        %2238 = vmatpush1.msra.mxu0 0.0
        %2239 = vmatprep.subr.mxu0 0.0
        %2240 = vmatpush1.msra.mxu0 0.0
        %2241 = vmatprep.subr.mxu0 0.0
        %2242 = vmatpush1.msra.mxu0 0.0
        %2243 = vmatprep.subr.mxu0 0.0
        %2244 = vmatpush1.msra.mxu0 0.0
        %2245 = vmatprep.subr.mxu0 0.0
        %2246 = vmatpush1.msra.mxu0 0.0
        %2247 = vmatprep.subr.mxu0 0.0
        %2248 = vmatpush1.msra.mxu0 0.0
        %2249 = vmatprep.subr.mxu0 0.0
        %2250 = vmatpush1.msra.mxu0 0.0
        %2251 = vmatprep.subr.mxu0 0.0
        %2252 = vmatpush1.msra.mxu0 0.0
        %2253 = vmatprep.subr.mxu0 0.0
        %2254 = vmatpush1.msra.mxu0 0.0
        %2255 = vmatprep.subr.mxu0 0.0
        %2256 = vmatpush1.msra.mxu0 0.0
        %2257 = vmatprep.subr.mxu0 0.0
        %2258 = vmatpush1.msra.mxu0 0.0
        %2259 = vmatprep.subr.mxu0 0.0
        %2260 = vmatpush1.msra.mxu0 0.0
        %2261 = vmatprep.subr.mxu0 0.0
        %2262 = vmatpush1.msra.mxu0 0.0
        %2263 = vmatprep.subr.mxu0 0.0
        %2264 = vmatpush1.msra.mxu0 0.0
        %2265 = vmatprep.subr.mxu0 0.0
        %2266 = vmatpush1.msra.mxu0 0.0
        %2267 = vmatprep.subr.mxu0 0.0
        %2268 = vmatpush1.msra.mxu0 0.0
        %2269 = vmatprep.mubr.f32.mxu0 0.0
        %2270 = vmatmul.mubr.f32.gmra.mrb[0].mxu0 %v2203
        %v2271 = vpop.f32.mrb[0].mxu0
        %v2272 = vadd.f32 0.0, %v2271
        %v2273 = vpop.f32.mrb[0].mxu0
        %2274 = vdwg.mxu0
        %v2275 = vlaneseq
        %v2276 = vshrl.u32 %v2275, 7
        %v2277 = vsub.s32 0, %v2276
        %v2278 = vrot.slane %v2272, %v2277
        %vm2279 = vcmask 31744
        %2280 = vst.msk [vmem:[%s877] sm:$0xff] %vm2279, %v2278
      $region104: #{tpu_custom_call.1} parent=99 // pred_fallthru
        _
      %p2281 = scmp.lt.s32.totalorder %s37, 1
      %s2282 = scalar_select %p2281, %s37, 1
      %s2283 = smul.addr %s2282, 8
      %s2284 = scalar_lea.vmem %s20, %s2283
      // Predicated region
      $region105: #{tpu_custom_call.1} parent=99 // pred_check
        %p2285 = pneg %p548
      $region106: #{tpu_custom_call.1} parent=99 // pred_check_branch
        %2287 = sbr.rel (%p2285) target = $region108
      $region107: #{tpu_custom_call.1} parent=99 // pred_region
        _
      $region108: #{tpu_custom_call.1} parent=99 // pred_fallthru
        _
    $region100: #{tpu_custom_call.1} parent=5 // pred_fallthru
      _
    %p2288 = scmp.le.s32.totalorder 2, %s28
    // Predicated region
    $region109: #{tpu_custom_call.1} parent=5 // pred_check
      %p2289 = pneg %p2288
    $region110: #{tpu_custom_call.1} parent=5 // pred_check_branch
      %2291 = sbr.rel (%p2289) target = $region112
    $region111: #{tpu_custom_call.1} parent=5 // pred_region
      %s2292 = ssub.s32 %s28, 2
      // Predicated region
      $region113: #{tpu_custom_call.1} parent=111 // pred_check
        %p2293 = pneg %p554
      $region114: #{tpu_custom_call.1} parent=111 // pred_check_branch
        %2295 = sbr.rel (%p2293) target = $region116
      $region115: #{tpu_custom_call.1} parent=111 // pred_region
        %p2296 = scmp.lt.s32.totalorder %s39, 1
        %s2297 = scalar_select %p2296, %s39, 1
        %s2298 = smul.addr %s2297, 8
        %s2299 = scalar_lea.vmem %s20, %s2298
      $region116: #{tpu_custom_call.1} parent=111 // pred_fallthru
        _
    $region112: #{tpu_custom_call.1} parent=5 // pred_fallthru
      _
  $region6: #{tpu_custom_call.1} parent=0 // loop_footer
    %s32 = sadd.s32 1, %s28
  $region7: #{tpu_custom_call.1} parent=0 // loop_footer_branch
    %27 = sbr.rel target = $region3
  $region8: #{tpu_custom_call.1} parent=0 // loop_exit
    _

</llo_original>
